<compile_context>
chip_gen: v7x
topology: tpu7x:2x2x1
jax: 0.10.0
libtpu: 0.0.40
codegen_flags: <defaults>
</compile_context>

<pallas_src>
import math
import functools

import numpy as np
import jax
import jax.numpy as jnp
from jax.experimental import pallas as pl
from jax.experimental.pallas import tpu as pltpu


# ----------------------------------------------------------------------------
# config
# ----------------------------------------------------------------------------
class Config:
    emb_dim = 32
    hid_dim = 32
    z_dim = 32
    num_head = 2
    nlayers = 1
    decoder_n_layer = 2
    seq_len = 8
    num_points = 4
    dropout = 0.0          # TODO(synk): dropout omitted (eval-mode identity)
    sample = False         # forward() discards qm/qv when False
    constrain_b = "softplus"
    b_max = 20.0
    s_min = 1e-3


# ----------------------------------------------------------------------------
# in-kernel math helpers (traced inside the Pallas kernel)
# ----------------------------------------------------------------------------
def _softplus(x):
    # numerically stable softplus (log1p form, matches F.softplus)
    return jnp.maximum(x, 0.0) + jnp.log1p(jnp.exp(-jnp.abs(x)))


def _elu(x):
    # guard exp() in the discarded branch to avoid spurious overflow
    return jnp.where(x > 0.0, x, jnp.exp(jnp.minimum(x, 0.0)) - 1.0)


def _layernorm(x, g, b, eps=1e-5):
    mu = jnp.mean(x, axis=-1, keepdims=True)
    d = x - mu
    var = jnp.mean(d * d, axis=-1, keepdims=True)
    return d * jax.lax.rsqrt(var + eps) * g + b


# ----------------------------------------------------------------------------
# static slab layout: every parameter lives at a fixed (row, nrows, ncols)
# inside one of two parameter slabs (lane offset 0, 8-row-aligned entries)
# ----------------------------------------------------------------------------
def _round8(n):
    return -(-n // 8) * 8


def build_layout(cfg):
    E, H, Hd, Z = cfg.emb_dim, cfg.num_head, cfg.hid_dim, cfg.z_dim
    Dh = E // H
    out_dim = cfg.seq_len + cfg.num_points

    def add(tbl, name, nrows, ncols):
        tbl[name] = (tbl["_rows"], nrows, ncols)
        tbl["_rows"] += _round8(nrows)

    p_nar = {"_rows": 0}        # narrow slab: encoder params (width max(E, Hd, Z))
    p_wid = {"_rows": 0}        # wide slab: fused decoder heads (width 3*Hd)

    add(p_nar, "enc_w", 3 + E, E)            # [enc_w*sqrt(E) ; I_E]  (PE pass-through)
    for li in range(cfg.nlayers):
        for hh in range(H):
            add(p_nar, f"qw_{li}_{hh}", E, Dh)
            add(p_nar, f"kw_{li}_{hh}", E, Dh)
            add(p_nar, f"vw_{li}_{hh}", E, Dh)
            add(p_nar, f"qb_{li}_{hh}", 1, Dh)
        add(p_nar, f"outw_{li}", E, E)
        add(p_nar, f"outb_{li}", 1, E)       # merged: v_b @ out_w + out_b
        add(p_nar, f"ff1w_{li}", E, Hd)
        add(p_nar, f"ff1b_{li}", 1, Hd)
        add(p_nar, f"ff2w_{li}", Hd, E)
        add(p_nar, f"ff2b_{li}", 1, E)
        for nm in ("ln1g", "ln1b", "ln2g", "ln2b"):
            add(p_nar, f"{nm}_{li}", 1, E)
    add(p_nar, "decw", E, Z)                 # mean columns only (sample=False)
    add(p_nar, "decb", 1, Z)

    add(p_wid, "d0w", Z, 3 * Hd)             # shared-z layer-0, heads concatenated
    add(p_wid, "d0b", 1, 3 * Hd)
    for i in range(1, cfg.decoder_n_layer):
        add(p_wid, f"d{i}w", 3 * Hd, 3 * Hd)   # block diagonal
        add(p_wid, f"d{i}b", 1, 3 * Hd)
    add(p_wid, "dow", 3 * Hd, 4 * out_dim)   # block diagonal (ragged columns)
    add(p_wid, "dob", 1, 4 * out_dim)

    return {
        "nar": p_nar, "wid": p_wid,
        "nar_shape": (_round8(p_nar["_rows"]), max(E, Hd, Z)),
        "wid_shape": (_round8(p_wid["_rows"]), max(3 * Hd, 4 * out_dim)),
    }


# ----------------------------------------------------------------------------
# the single fused kernel
# ----------------------------------------------------------------------------
def _deepstpp_fused_kernel(x_ref, pn_ref, pw_ref, o_ref, *, B, cfg, lnar, lwid):
    f32 = jnp.float32
    S, E, H = cfg.seq_len, cfg.emb_dim, cfg.num_head
    Dh = E // H
    BS = B * S
    out_dim = cfg.seq_len + cfg.num_points

    def nar(name):
        r, nr, nc = lnar[name]
        return pn_ref[r:r + nr, 0:nc]

    def wid(name):
        r, nr, nc = lwid[name]
        return pw_ref[r:r + nr, 0:nc]

    # ---- embedding + positional encoding in ONE matmul ----
    # x_ref = [event features (3) | wrapper-computed PE (E)]; the enc_w slab
    # entry is [enc_w * sqrt(E) ; I_E], so h = x*sqrt(E) @ W_enc + PE.
    h = jnp.dot(x_ref[...], nar("enc_w"), preferred_element_type=f32)      # (BS, E)

    # ---- block-diagonal causal mask for packed (head, batch, seq) rows ----
    R = H * BS
    ri = jax.lax.broadcasted_iota(jnp.int32, (R, R), 0)
    ci = jax.lax.broadcasted_iota(jnp.int32, (R, R), 1)
    blk_r = jnp.floor((ri.astype(f32) + 0.5) * (1.0 / S))    # == ri // S, exact
    blk_c = jnp.floor((ci.astype(f32) + 0.5) * (1.0 / S))
    valid = (blk_r == blk_c) & (ci <= ri)
    attn_mask = jnp.where(valid, 0.0, -1e30).astype(f32)

    for li in range(cfg.nlayers):
        # per-head q/k/v (per-head weights pre-split at init; 1/sqrt(Dh) and the
        # q bias folded into qw/qb; k bias dropped; v bias folded into outb).
        q_h, k_h, v_h = [], [], []
        for hh in range(H):
            q_h.append(jnp.dot(h, nar(f"qw_{li}_{hh}"),
                               preferred_element_type=f32) + nar(f"qb_{li}_{hh}"))
            k_h.append(jnp.dot(h, nar(f"kw_{li}_{hh}"), preferred_element_type=f32))
            v_h.append(jnp.dot(h, nar(f"vw_{li}_{hh}"), preferred_element_type=f32))
        qp = jnp.concatenate(q_h, axis=0)        # (R, Dh), row = head*BS + b*S + s
        kp = jnp.concatenate(k_h, axis=0)
        vp = jnp.concatenate(v_h, axis=0)

        # one score matmul + one softmax + one PV matmul for all B*H blocks
        sc = jax.lax.dot_general(qp, kp, (((1,), (1,)), ((), ())),
                                 preferred_element_type=f32) + attn_mask   # (R, R)
        sc = sc - jnp.max(sc, axis=-1, keepdims=True)
        p = jnp.exp(sc)
        p = p / jnp.sum(p, axis=-1, keepdims=True)    # exact divide (denom >= 1)
        av = jnp.dot(p, vp, preferred_element_type=f32)                    # (R, Dh)

        # out-proj: head-concat folded into row-blocks of out_w (no lane concat)
        r_ow, _, _ = lnar[f"outw_{li}"]
        attn = nar(f"outb_{li}")                                           # (1, E)
        for hh in range(H):
            a_hh = av[hh * BS:(hh + 1) * BS, :]                            # (BS, Dh)
            w_hh = pn_ref[r_ow + hh * Dh:r_ow + (hh + 1) * Dh, 0:E]        # (Dh, E)
            attn = attn + jnp.dot(a_hh, w_hh, preferred_element_type=f32)

        h = _layernorm(h + attn, nar(f"ln1g_{li}"), nar(f"ln1b_{li}"))

        # ---- feed-forward (ReLU) + residual + LayerNorm ----
        ff = jnp.dot(h, nar(f"ff1w_{li}"), preferred_element_type=f32) + nar(f"ff1b_{li}")
        ff = jnp.maximum(ff, 0.0)
        ff = jnp.dot(ff, nar(f"ff2w_{li}"), preferred_element_type=f32) + nar(f"ff2b_{li}")
        h = _layernorm(h + ff, nar(f"ln2g_{li}"), nar(f"ln2b_{li}"))

    # ---- last position of each sequence via a tiny 0/1 selection matmul ----
    rs = jax.lax.broadcasted_iota(jnp.int32, (B, BS), 0)
    cs = jax.lax.broadcasted_iota(jnp.int32, (B, BS), 1)
    sel = (cs == rs * S + (S - 1)).astype(f32)
    h_last = jnp.dot(sel, h, preferred_element_type=f32)                   # (B, E)

    # posterior mean only (variance columns pruned at init; cfg.sample=False)
    z = jnp.dot(h_last, nar("decw"), preferred_element_type=f32) + nar("decb")

    # ---- fused w/b/s decoder MLPs (layer-0 concat, block-diag hidden/out) ----
    d = _elu(jnp.dot(z, wid("d0w"), preferred_element_type=f32) + wid("d0b"))
    for i in range(1, cfg.decoder_n_layer):
        d = _elu(jnp.dot(d, wid(f"d{i}w"), preferred_element_type=f32) + wid(f"d{i}b"))
    raw = jnp.dot(d, wid("dow"), preferred_element_type=f32) + wid("dob")  # (B, 4*out_dim)

    # ---- element-wise tails, lane-selected; ONE packed output store ----
    sp = _softplus(raw)
    w_val = sp + 1e-5                                             # w head: softplus + 1e-5
    s_val = pl.reciprocal(sp + (1e-5 + cfg.s_min), approx=True)   # 1 / (s_i + s_min)
    if cfg.constrain_b == "softplus":
        b_val = sp
    elif cfg.constrain_b == "tanh":
        b_val = jnp.tanh(raw) * cfg.b_max
    elif cfg.constrain_b == "sigmoid":
        b_val = cfg.b_max / (1.0 + jnp.exp(-raw))
    elif cfg.constrain_b == "neg-sigmoid":
        b_val = -cfg.b_max / (1.0 + jnp.exp(-raw))
    elif cfg.constrain_b == "clamp":
        b_val = jnp.clip(raw, -cfg.b_max, cfg.b_max)
    else:
        b_val = raw
    col = jax.lax.broadcasted_iota(jnp.int32, raw.shape, 1)
    o_ref[...] = jnp.where(col < out_dim, w_val,
                           jnp.where(col < 2 * out_dim, b_val, s_val))


# ----------------------------------------------------------------------------
# forward wrapper: one pallas_call, tiny XLA glue only for PE / final splits
# ----------------------------------------------------------------------------
def deepstpp_forward(st_x, params, *, cfg, layout):
    B, S, _ = st_x.shape
    E = cfg.emb_dim
    out_dim = cfg.seq_len + cfg.num_points

    # cumulative event times + sinusoidal PE (sin/cos stay in XLA; the kernel
    # adds PE through the identity block appended to enc_w — no scatters).
    x2d = st_x.reshape(B * S, 3).astype(jnp.float32)
    t = jnp.cumsum(st_x[..., 2].astype(jnp.float32), axis=1)              # (B, S)
    div = jnp.exp(jnp.arange(0, E, 2, dtype=jnp.float32)
                  * (-math.log(10000.0) / E))
    ang = t[..., None] * div                                              # (B, S, E/2)
    pe = jnp.stack([jnp.sin(ang), jnp.cos(ang)], axis=-1).reshape(B * S, E)
    x_slab = jnp.concatenate([x2d, pe], axis=1)                           # (B*S, 3+E)

    vmem = pl.BlockSpec(memory_space=pltpu.MemorySpace.VMEM)
    packed = pl.pallas_call(
        functools.partial(_deepstpp_fused_kernel, B=B, cfg=cfg,
                          lnar=layout["nar"], lwid=layout["wid"]),
        out_shape=jax.ShapeDtypeStruct((B, 4 * out_dim), jnp.float32),
        in_specs=[vmem, vmem, vmem],
        out_specs=vmem,
    )(x_slab, params["p_nar"], params["p_wid"])

    w_i = packed[:, :out_dim]
    b_i = packed[:, out_dim:2 * out_dim]
    # s-head columns were permuted at init to [x0, y0, x1, y1, ...] so this
    # reshape is inv_var directly (no jnp.stack needed).
    inv_var = packed[:, 2 * out_dim:].reshape(B, out_dim, 2)

    # cfg.sample == False -> z is the posterior mean; qm/qv are None
    return [None, None], w_i, b_i, inv_var


# ----------------------------------------------------------------------------
# deterministic parameter init (PyTorch-style fan-in uniform; synthetic) with
# all documented one-time parameter transforms + slab packing
# ----------------------------------------------------------------------------
def init_params(key, cfg, layout):
    E, H, Hd, Z = cfg.emb_dim, cfg.num_head, cfg.hid_dim, cfg.z_dim
    Dh = E // H
    out_dim = cfg.seq_len + cfg.num_points
    keys = iter(jax.random.split(key, 128))

    def unif(shape, bound):
        return np.asarray(jax.random.uniform(next(keys), shape, jnp.float32,
                                             -bound, bound))

    def lin(fan_in, fan_out, bound=None, bias=True):
        b_ = bound if bound is not None else 1.0 / math.sqrt(fan_in)
        w = unif((fan_in, fan_out), b_)
        return (w, unif((fan_out,), b_)) if bias else (w, None)

    p_nar = np.zeros(layout["nar_shape"], np.float32)
    p_wid = np.zeros(layout["wid_shape"], np.float32)

    def put(slab, tbl, name, val):
        val = np.asarray(val, np.float32)
        if val.ndim == 1:
            val = val[None, :]
        r, nr, nc = tbl[name]
        assert val.shape[0] <= nr and val.shape[1] <= nc, name
        slab[r:r + val.shape[0], :val.shape[1]] = val

    # --- Encoder.encoder: Linear(3, E, bias=False), weight U(-0.1, 0.1).
    # folded: * sqrt(E) scale, + identity block for PE pass-through.
    enc_w, _ = lin(3, E, bound=0.1, bias=False)
    put(p_nar, layout["nar"], "enc_w",
        np.concatenate([enc_w * math.sqrt(E), np.eye(E, dtype=np.float32)], 0))

    scale = 1.0 / math.sqrt(Dh)
    for li in range(cfg.nlayers):
        qkv_w, qkv_b = lin(E, 3 * E)                # MHA in_proj ([q|k|v] columns)
        out_w, out_b = lin(E, E)                    # MHA out_proj
        q_w, k_w, v_w = qkv_w[:, :E], qkv_w[:, E:2 * E], qkv_w[:, 2 * E:]
        q_b, v_b = qkv_b[:E], qkv_b[2 * E:]         # k bias is softmax-invariant -> dropped
        for hh in range(H):
            sl = slice(hh * Dh, (hh + 1) * Dh)
            put(p_nar, layout["nar"], f"qw_{li}_{hh}", q_w[:, sl] * scale)
            put(p_nar, layout["nar"], f"qb_{li}_{hh}", q_b[sl] * scale)
            put(p_nar, layout["nar"], f"kw_{li}_{hh}", k_w[:, sl])
            put(p_nar, layout["nar"], f"vw_{li}_{hh}", v_w[:, sl])
        put(p_nar, layout["nar"], f"outw_{li}", out_w)
        put(p_nar, layout["nar"], f"outb_{li}", v_b @ out_w + out_b)  # v bias folded
        ff1_w, ff1_b = lin(E, Hd)
        ff2_w, ff2_b = lin(Hd, E)
        put(p_nar, layout["nar"], f"ff1w_{li}", ff1_w)
        put(p_nar, layout["nar"], f"ff1b_{li}", ff1_b)
        put(p_nar, layout["nar"], f"ff2w_{li}", ff2_w)
        put(p_nar, layout["nar"], f"ff2b_{li}", ff2_b)
        put(p_nar, layout["nar"], f"ln1g_{li}", np.ones(E, np.float32))
        put(p_nar, layout["nar"], f"ln1b_{li}", np.zeros(E, np.float32))
        put(p_nar, layout["nar"], f"ln2g_{li}", np.ones(E, np.float32))
        put(p_nar, layout["nar"], f"ln2b_{li}", np.zeros(E, np.float32))

    # --- Encoder.decoder: Linear(E, 2Z), weight U(-0.1, 0.1), bias zeroed.
    # Only the mean columns are kept (variance path dead while sample=False).
    encdec_w, _ = lin(E, 2 * Z, bound=0.1, bias=False)
    put(p_nar, layout["nar"], "decw", encdec_w[:, :Z])
    put(p_nar, layout["nar"], "decb", np.zeros(Z, np.float32))

    # --- three decoder MLP heads packed: layer-0 concat + block-diag hidden/out
    def head(out_d):
        ws, bs = [], []
        w, b = lin(Z, Hd); ws.append(w); bs.append(b)
        for _ in range(1, cfg.decoder_n_layer):
            w, b = lin(Hd, Hd); ws.append(w); bs.append(b)
        w, b = lin(Hd, out_d); ws.append(w); bs.append(b)
        return ws, bs

    w_ws, w_bs = head(out_dim)
    b_ws, b_bs = head(out_dim)
    s_ws, s_bs = head(2 * out_dim)

    # permute s-head output columns to [x0, y0, x1, y1, ...] so the packed
    # kernel output reshapes straight into inv_var (B, out_dim, 2).
    perm = np.arange(2 * out_dim).reshape(2, out_dim).T.reshape(-1)
    s_ws[-1] = s_ws[-1][:, perm]
    s_bs[-1] = s_bs[-1][perm]

    put(p_wid, layout["wid"], "d0w", np.concatenate([w_ws[0], b_ws[0], s_ws[0]], 1))
    put(p_wid, layout["wid"], "d0b", np.concatenate([w_bs[0], b_bs[0], s_bs[0]]))
    for i in range(1, cfg.decoder_n_layer):
        bd = np.zeros((3 * Hd, 3 * Hd), np.float32)
        for j, ws in enumerate((w_ws, b_ws, s_ws)):
            bd[j * Hd:(j + 1) * Hd, j * Hd:(j + 1) * Hd] = ws[i]
        put(p_wid, layout["wid"], f"d{i}w", bd)
        put(p_wid, layout["wid"], f"d{i}b",
            np.concatenate([w_bs[i], b_bs[i], s_bs[i]]))
    ow = np.zeros((3 * Hd, 4 * out_dim), np.float32)
    ow[0 * Hd:1 * Hd, 0:out_dim] = w_ws[-1]
    ow[1 * Hd:2 * Hd, out_dim:2 * out_dim] = b_ws[-1]
    ow[2 * Hd:3 * Hd, 2 * out_dim:] = s_ws[-1]
    put(p_wid, layout["wid"], "dow", ow)
    put(p_wid, layout["wid"], "dob",
        np.concatenate([w_bs[-1], b_bs[-1], s_bs[-1]]))

    return {
        "p_nar": jnp.asarray(p_nar),
        "p_wid": jnp.asarray(p_wid),
        # present on the module but unused by forward():
        "background": jax.random.uniform(next(keys), (cfg.num_points, 2),
                                         jnp.float32),
    }


# ----------------------------------------------------------------------------
if __name__ == "__main__":
    cfg = Config()
    layout = build_layout(cfg)

    root = jax.random.PRNGKey(0)
    k_params, k_data = jax.random.split(root)
    params = init_params(k_params, cfg, layout)

    batch = 2
    st_x = jax.random.uniform(k_data, (batch, cfg.seq_len, 3), jnp.float32)

    fwd = jax.jit(functools.partial(deepstpp_forward, cfg=cfg, layout=layout))
    (qm, qv), w_i, b_i, inv_var = fwd(st_x, params)
    jax.block_until_ready((w_i, b_i, inv_var))

    out_dim = cfg.seq_len + cfg.num_points
    assert w_i.shape == (batch, out_dim)
    assert b_i.shape == (batch, out_dim)
    assert inv_var.shape == (batch, out_dim, 2)
    assert qm is None and qv is None
    assert bool(jnp.all(jnp.isfinite(w_i))) and bool(jnp.all(w_i > 0.0))
    assert bool(jnp.all(jnp.isfinite(b_i)))
    assert bool(jnp.all(jnp.isfinite(inv_var))) and bool(jnp.all(inv_var > 0.0))
    print("KERNEL_OK")
</pallas_src>

<mosaic_0001>
module attributes {stable_mosaic.version = 11 : i64} {
  func.func @_deepstpp_fused_kernel(%arg0: memref<16x35xf32, #tpu.memory_space<vmem>>, %arg1: memref<440x32xf32, #tpu.memory_space<vmem>>, %arg2: memref<248x96xf32, #tpu.memory_space<vmem>>, %arg3: memref<2x48xf32, #tpu.memory_space<vmem>>) attributes {dimension_semantics = [], scalar_prefetch = 0 : i64, scratch_operands = 0 : i64, tpu.core_type = #tpu.core_type<tc>} {
    %c0 = arith.constant 0 : index
    %c0_0 = arith.constant 0 : index
    %0 = vector.load %arg0[%c0, %c0_0] : memref<16x35xf32, #tpu.memory_space<vmem>>, vector<16x35xf32>
    %c0_1 = arith.constant 0 : index
    %c0_2 = arith.constant 0 : index
    %1 = vector.load %arg1[%c0_1, %c0_2] : memref<440x32xf32, #tpu.memory_space<vmem>>, vector<35x32xf32>
    %cst = arith.constant dense<0.000000e+00> : vector<16x32xf32>
    %2 = tpu.matmul %0, %1, %cst {dimension_numbers = #tpu.dot_dimension_numbers<[1], [0], [0], [1], [0, 0, 1, 1], [], []>} : vector<16x35xf32>, vector<35x32xf32>, vector<16x32xf32> -> vector<16x32xf32>
    %3 = tpu.iota {dimensions = array<i32: 0>} : vector<32x32xi32>
    %4 = tpu.iota {dimensions = array<i32: 1>} : vector<32x32xi32>
    %5 = arith.sitofp %3 : vector<32x32xi32> to vector<32x32xf32>
    %cst_3 = arith.constant 5.000000e-01 : f32
    %6 = vector.broadcast %cst_3 : f32 to vector<32x32xf32>
    %7 = arith.addf %5, %6 : vector<32x32xf32>
    %cst_4 = arith.constant 1.250000e-01 : f32
    %8 = vector.broadcast %cst_4 : f32 to vector<32x32xf32>
    %9 = arith.mulf %7, %8 : vector<32x32xf32>
    %10 = math.floor %9 : vector<32x32xf32>
    %11 = arith.sitofp %4 : vector<32x32xi32> to vector<32x32xf32>
    %cst_5 = arith.constant 5.000000e-01 : f32
    %12 = vector.broadcast %cst_5 : f32 to vector<32x32xf32>
    %13 = arith.addf %11, %12 : vector<32x32xf32>
    %cst_6 = arith.constant 1.250000e-01 : f32
    %14 = vector.broadcast %cst_6 : f32 to vector<32x32xf32>
    %15 = arith.mulf %13, %14 : vector<32x32xf32>
    %16 = math.floor %15 : vector<32x32xf32>
    %17 = arith.cmpf oeq, %10, %16 : vector<32x32xf32>
    %18 = arith.cmpi sle, %4, %3 : vector<32x32xi32>
    %19 = arith.andi %17, %18 : vector<32x32xi1>
    %cst_7 = arith.constant 0.000000e+00 : f32
    %cst_8 = arith.constant -1.000000e+30 : f32
    %20 = vector.broadcast %cst_7 : f32 to vector<32x32xf32>
    %21 = vector.broadcast %cst_8 : f32 to vector<32x32xf32>
    %22 = arith.select %19, %20, %21 : vector<32x32xi1>, vector<32x32xf32>
    %c40 = arith.constant 40 : index
    %c0_9 = arith.constant 0 : index
    %23 = vector.load %arg1[%c40, %c0_9] : memref<440x32xf32, #tpu.memory_space<vmem>>, vector<32x16xf32>
    %cst_10 = arith.constant dense<0.000000e+00> : vector<16x16xf32>
    %24 = tpu.matmul %2, %23, %cst_10 {dimension_numbers = #tpu.dot_dimension_numbers<[1], [0], [0], [1], [0, 0, 1, 1], [], []>} : vector<16x32xf32>, vector<32x16xf32>, vector<16x16xf32> -> vector<16x16xf32>
    %c136 = arith.constant 136 : index
    %c0_11 = arith.constant 0 : index
    %25 = vector.load %arg1[%c136, %c0_11] : memref<440x32xf32, #tpu.memory_space<vmem>>, vector<1x16xf32>
    %26 = vector.broadcast %25 : vector<1x16xf32> to vector<16x16xf32>
    %27 = arith.addf %24, %26 : vector<16x16xf32>
    %c72 = arith.constant 72 : index
    %c0_12 = arith.constant 0 : index
    %28 = vector.load %arg1[%c72, %c0_12] : memref<440x32xf32, #tpu.memory_space<vmem>>, vector<32x16xf32>
    %cst_13 = arith.constant dense<0.000000e+00> : vector<16x16xf32>
    %29 = tpu.matmul %2, %28, %cst_13 {dimension_numbers = #tpu.dot_dimension_numbers<[1], [0], [0], [1], [0, 0, 1, 1], [], []>} : vector<16x32xf32>, vector<32x16xf32>, vector<16x16xf32> -> vector<16x16xf32>
    %c104 = arith.constant 104 : index
    %c0_14 = arith.constant 0 : index
    %30 = vector.load %arg1[%c104, %c0_14] : memref<440x32xf32, #tpu.memory_space<vmem>>, vector<32x16xf32>
    %cst_15 = arith.constant dense<0.000000e+00> : vector<16x16xf32>
    %31 = tpu.matmul %2, %30, %cst_15 {dimension_numbers = #tpu.dot_dimension_numbers<[1], [0], [0], [1], [0, 0, 1, 1], [], []>} : vector<16x32xf32>, vector<32x16xf32>, vector<16x16xf32> -> vector<16x16xf32>
    %c144 = arith.constant 144 : index
    %c0_16 = arith.constant 0 : index
    %32 = vector.load %arg1[%c144, %c0_16] : memref<440x32xf32, #tpu.memory_space<vmem>>, vector<32x16xf32>
    %cst_17 = arith.constant dense<0.000000e+00> : vector<16x16xf32>
    %33 = tpu.matmul %2, %32, %cst_17 {dimension_numbers = #tpu.dot_dimension_numbers<[1], [0], [0], [1], [0, 0, 1, 1], [], []>} : vector<16x32xf32>, vector<32x16xf32>, vector<16x16xf32> -> vector<16x16xf32>
    %c240 = arith.constant 240 : index
    %c0_18 = arith.constant 0 : index
    %34 = vector.load %arg1[%c240, %c0_18] : memref<440x32xf32, #tpu.memory_space<vmem>>, vector<1x16xf32>
    %35 = vector.broadcast %34 : vector<1x16xf32> to vector<16x16xf32>
    %36 = arith.addf %33, %35 : vector<16x16xf32>
    %c176 = arith.constant 176 : index
    %c0_19 = arith.constant 0 : index
    %37 = vector.load %arg1[%c176, %c0_19] : memref<440x32xf32, #tpu.memory_space<vmem>>, vector<32x16xf32>
    %cst_20 = arith.constant dense<0.000000e+00> : vector<16x16xf32>
    %38 = tpu.matmul %2, %37, %cst_20 {dimension_numbers = #tpu.dot_dimension_numbers<[1], [0], [0], [1], [0, 0, 1, 1], [], []>} : vector<16x32xf32>, vector<32x16xf32>, vector<16x16xf32> -> vector<16x16xf32>
    %c208 = arith.constant 208 : index
    %c0_21 = arith.constant 0 : index
    %39 = vector.load %arg1[%c208, %c0_21] : memref<440x32xf32, #tpu.memory_space<vmem>>, vector<32x16xf32>
    %cst_22 = arith.constant dense<0.000000e+00> : vector<16x16xf32>
    %40 = tpu.matmul %2, %39, %cst_22 {dimension_numbers = #tpu.dot_dimension_numbers<[1], [0], [0], [1], [0, 0, 1, 1], [], []>} : vector<16x32xf32>, vector<32x16xf32>, vector<16x16xf32> -> vector<16x16xf32>
    %41 = tpu.concatenate %27, %36 in 0 : vector<16x16xf32>, vector<16x16xf32> -> vector<32x16xf32>
    %42 = tpu.concatenate %29, %38 in 0 : vector<16x16xf32>, vector<16x16xf32> -> vector<32x16xf32>
    %43 = tpu.concatenate %31, %40 in 0 : vector<16x16xf32>, vector<16x16xf32> -> vector<32x16xf32>
    %cst_23 = arith.constant dense<0.000000e+00> : vector<32x32xf32>
    %44 = tpu.matmul %41, %42, %cst_23 {dimension_numbers = #tpu.dot_dimension_numbers<[1], [1], [0], [0], [0, 0, 1, 0], [], []>} : vector<32x16xf32>, vector<32x16xf32>, vector<32x32xf32> -> vector<32x32xf32>
    %45 = arith.addf %44, %22 : vector<32x32xf32>
    %cst_24 = arith.constant dense<0xFF800000> : vector<32xf32>
    %46 = vector.multi_reduction <maximumf>, %45, %cst_24 [1] : vector<32x32xf32> to vector<32xf32>
    %47 = vector.shape_cast %46 : vector<32xf32> to vector<32x1xf32>
    %48 = vector.broadcast %47 : vector<32x1xf32> to vector<32x32xf32>
    %49 = arith.subf %45, %48 : vector<32x32xf32>
    %50 = math.exp %49 : vector<32x32xf32>
    %cst_25 = arith.constant dense<0.000000e+00> : vector<32xf32>
    %51 = vector.multi_reduction <add>, %50, %cst_25 [1] : vector<32x32xf32> to vector<32xf32>
    %52 = vector.shape_cast %51 : vector<32xf32> to vector<32x1xf32>
    %53 = vector.broadcast %52 : vector<32x1xf32> to vector<32x32xf32>
    %54 = arith.divf %50, %53 : vector<32x32xf32>
    %cst_26 = arith.constant dense<0.000000e+00> : vector<32x16xf32>
    %55 = tpu.matmul %54, %43, %cst_26 {dimension_numbers = #tpu.dot_dimension_numbers<[1], [0], [0], [1], [0, 0, 1, 1], [], []>} : vector<32x32xf32>, vector<32x16xf32>, vector<32x16xf32> -> vector<32x16xf32>
    %c280 = arith.constant 280 : index
    %c0_27 = arith.constant 0 : index
    %56 = vector.load %arg1[%c280, %c0_27] : memref<440x32xf32, #tpu.memory_space<vmem>>, vector<1x32xf32>
    %57 = vector.extract_strided_slice %55 {offsets = [0, 0], sizes = [16, 16], strides = [1, 1]} : vector<32x16xf32> to vector<16x16xf32>
    %c248 = arith.constant 248 : index
    %c0_28 = arith.constant 0 : index
    %58 = vector.load %arg1[%c248, %c0_28] : memref<440x32xf32, #tpu.memory_space<vmem>>, vector<16x32xf32>
    %cst_29 = arith.constant dense<0.000000e+00> : vector<16x32xf32>
    %59 = tpu.matmul %57, %58, %cst_29 {dimension_numbers = #tpu.dot_dimension_numbers<[1], [0], [0], [1], [0, 0, 1, 1], [], []>} : vector<16x16xf32>, vector<16x32xf32>, vector<16x32xf32> -> vector<16x32xf32>
    %60 = vector.broadcast %56 : vector<1x32xf32> to vector<16x32xf32>
    %61 = arith.addf %60, %59 : vector<16x32xf32>
    %62 = vector.extract_strided_slice %55 {offsets = [16, 0], sizes = [16, 16], strides = [1, 1]} : vector<32x16xf32> to vector<16x16xf32>
    %c264 = arith.constant 264 : index
    %c0_30 = arith.constant 0 : index
    %63 = vector.load %arg1[%c264, %c0_30] : memref<440x32xf32, #tpu.memory_space<vmem>>, vector<16x32xf32>
    %cst_31 = arith.constant dense<0.000000e+00> : vector<16x32xf32>
    %64 = tpu.matmul %62, %63, %cst_31 {dimension_numbers = #tpu.dot_dimension_numbers<[1], [0], [0], [1], [0, 0, 1, 1], [], []>} : vector<16x16xf32>, vector<16x32xf32>, vector<16x32xf32> -> vector<16x32xf32>
    %65 = arith.addf %61, %64 : vector<16x32xf32>
    %66 = arith.addf %2, %65 : vector<16x32xf32>
    %c368 = arith.constant 368 : index
    %c0_32 = arith.constant 0 : index
    %67 = vector.load %arg1[%c368, %c0_32] : memref<440x32xf32, #tpu.memory_space<vmem>>, vector<1x32xf32>
    %c376 = arith.constant 376 : index
    %c0_33 = arith.constant 0 : index
    %68 = vector.load %arg1[%c376, %c0_33] : memref<440x32xf32, #tpu.memory_space<vmem>>, vector<1x32xf32>
    %cst_34 = arith.constant dense<0.000000e+00> : vector<16xf32>
    %69 = vector.multi_reduction <add>, %66, %cst_34 [1] : vector<16x32xf32> to vector<16xf32>
    %70 = vector.shape_cast %69 : vector<16xf32> to vector<16x1xf32>
    %cst_35 = arith.constant 3.200000e+01 : f32
    %71 = vector.broadcast %cst_35 : f32 to vector<16x1xf32>
    %72 = arith.divf %70, %71 : vector<16x1xf32>
    %73 = vector.broadcast %72 : vector<16x1xf32> to vector<16x32xf32>
    %74 = arith.subf %66, %73 : vector<16x32xf32>
    %75 = arith.mulf %74, %74 : vector<16x32xf32>
    %cst_36 = arith.constant dense<0.000000e+00> : vector<16xf32>
    %76 = vector.multi_reduction <add>, %75, %cst_36 [1] : vector<16x32xf32> to vector<16xf32>
    %77 = vector.shape_cast %76 : vector<16xf32> to vector<16x1xf32>
    %cst_37 = arith.constant 3.200000e+01 : f32
    %78 = vector.broadcast %cst_37 : f32 to vector<16x1xf32>
    %79 = arith.divf %77, %78 : vector<16x1xf32>
    %cst_38 = arith.constant 9.99999974E-6 : f32
    %80 = vector.broadcast %cst_38 : f32 to vector<16x1xf32>
    %81 = arith.addf %79, %80 : vector<16x1xf32>
    %82 = math.rsqrt %81 : vector<16x1xf32>
    %83 = vector.broadcast %82 : vector<16x1xf32> to vector<16x32xf32>
    %84 = arith.mulf %74, %83 : vector<16x32xf32>
    %85 = vector.broadcast %67 : vector<1x32xf32> to vector<16x32xf32>
    %86 = arith.mulf %84, %85 : vector<16x32xf32>
    %87 = vector.broadcast %68 : vector<1x32xf32> to vector<16x32xf32>
    %88 = arith.addf %86, %87 : vector<16x32xf32>
    %c288 = arith.constant 288 : index
    %c0_39 = arith.constant 0 : index
    %89 = vector.load %arg1[%c288, %c0_39] : memref<440x32xf32, #tpu.memory_space<vmem>>, vector<32x32xf32>
    %cst_40 = arith.constant dense<0.000000e+00> : vector<16x32xf32>
    %90 = tpu.matmul %88, %89, %cst_40 {dimension_numbers = #tpu.dot_dimension_numbers<[1], [0], [0], [1], [0, 0, 1, 1], [], []>} : vector<16x32xf32>, vector<32x32xf32>, vector<16x32xf32> -> vector<16x32xf32>
    %c320 = arith.constant 320 : index
    %c0_41 = arith.constant 0 : index
    %91 = vector.load %arg1[%c320, %c0_41] : memref<440x32xf32, #tpu.memory_space<vmem>>, vector<1x32xf32>
    %92 = vector.broadcast %91 : vector<1x32xf32> to vector<16x32xf32>
    %93 = arith.addf %90, %92 : vector<16x32xf32>
    %cst_42 = arith.constant 0.000000e+00 : f32
    %94 = vector.broadcast %cst_42 : f32 to vector<16x32xf32>
    %95 = arith.maximumf %93, %94 : vector<16x32xf32>
    %c328 = arith.constant 328 : index
    %c0_43 = arith.constant 0 : index
    %96 = vector.load %arg1[%c328, %c0_43] : memref<440x32xf32, #tpu.memory_space<vmem>>, vector<32x32xf32>
    %cst_44 = arith.constant dense<0.000000e+00> : vector<16x32xf32>
    %97 = tpu.matmul %95, %96, %cst_44 {dimension_numbers = #tpu.dot_dimension_numbers<[1], [0], [0], [1], [0, 0, 1, 1], [], []>} : vector<16x32xf32>, vector<32x32xf32>, vector<16x32xf32> -> vector<16x32xf32>
    %c360 = arith.constant 360 : index
    %c0_45 = arith.constant 0 : index
    %98 = vector.load %arg1[%c360, %c0_45] : memref<440x32xf32, #tpu.memory_space<vmem>>, vector<1x32xf32>
    %99 = vector.broadcast %98 : vector<1x32xf32> to vector<16x32xf32>
    %100 = arith.addf %97, %99 : vector<16x32xf32>
    %101 = arith.addf %88, %100 : vector<16x32xf32>
    %c384 = arith.constant 384 : index
    %c0_46 = arith.constant 0 : index
    %102 = vector.load %arg1[%c384, %c0_46] : memref<440x32xf32, #tpu.memory_space<vmem>>, vector<1x32xf32>
    %c392 = arith.constant 392 : index
    %c0_47 = arith.constant 0 : index
    %103 = vector.load %arg1[%c392, %c0_47] : memref<440x32xf32, #tpu.memory_space<vmem>>, vector<1x32xf32>
    %cst_48 = arith.constant dense<0.000000e+00> : vector<16xf32>
    %104 = vector.multi_reduction <add>, %101, %cst_48 [1] : vector<16x32xf32> to vector<16xf32>
    %105 = vector.shape_cast %104 : vector<16xf32> to vector<16x1xf32>
    %cst_49 = arith.constant 3.200000e+01 : f32
    %106 = vector.broadcast %cst_49 : f32 to vector<16x1xf32>
    %107 = arith.divf %105, %106 : vector<16x1xf32>
    %108 = vector.broadcast %107 : vector<16x1xf32> to vector<16x32xf32>
    %109 = arith.subf %101, %108 : vector<16x32xf32>
    %110 = arith.mulf %109, %109 : vector<16x32xf32>
    %cst_50 = arith.constant dense<0.000000e+00> : vector<16xf32>
    %111 = vector.multi_reduction <add>, %110, %cst_50 [1] : vector<16x32xf32> to vector<16xf32>
    %112 = vector.shape_cast %111 : vector<16xf32> to vector<16x1xf32>
    %cst_51 = arith.constant 3.200000e+01 : f32
    %113 = vector.broadcast %cst_51 : f32 to vector<16x1xf32>
    %114 = arith.divf %112, %113 : vector<16x1xf32>
    %cst_52 = arith.constant 9.99999974E-6 : f32
    %115 = vector.broadcast %cst_52 : f32 to vector<16x1xf32>
    %116 = arith.addf %114, %115 : vector<16x1xf32>
    %117 = math.rsqrt %116 : vector<16x1xf32>
    %118 = vector.broadcast %117 : vector<16x1xf32> to vector<16x32xf32>
    %119 = arith.mulf %109, %118 : vector<16x32xf32>
    %120 = vector.broadcast %102 : vector<1x32xf32> to vector<16x32xf32>
    %121 = arith.mulf %119, %120 : vector<16x32xf32>
    %122 = vector.broadcast %103 : vector<1x32xf32> to vector<16x32xf32>
    %123 = arith.addf %121, %122 : vector<16x32xf32>
    %124 = tpu.iota {dimensions = array<i32: 0>} : vector<2x16xi32>
    %125 = tpu.iota {dimensions = array<i32: 1>} : vector<2x16xi32>
    %c8_i32 = arith.constant 8 : i32
    %126 = vector.broadcast %c8_i32 : i32 to vector<2x16xi32>
    %127 = arith.muli %124, %126 : vector<2x16xi32>
    %c7_i32 = arith.constant 7 : i32
    %128 = vector.broadcast %c7_i32 : i32 to vector<2x16xi32>
    %129 = arith.addi %127, %128 : vector<2x16xi32>
    %130 = arith.cmpi eq, %125, %129 : vector<2x16xi32>
    %131 = arith.extui %130 : vector<2x16xi1> to vector<2x16xi32>
    %132 = arith.sitofp %131 : vector<2x16xi32> to vector<2x16xf32>
    %cst_53 = arith.constant dense<0.000000e+00> : vector<2x32xf32>
    %133 = tpu.matmul %132, %123, %cst_53 {dimension_numbers = #tpu.dot_dimension_numbers<[1], [0], [0], [1], [0, 0, 1, 1], [], []>} : vector<2x16xf32>, vector<16x32xf32>, vector<2x32xf32> -> vector<2x32xf32>
    %c400 = arith.constant 400 : index
    %c0_54 = arith.constant 0 : index
    %134 = vector.load %arg1[%c400, %c0_54] : memref<440x32xf32, #tpu.memory_space<vmem>>, vector<32x32xf32>
    %cst_55 = arith.constant dense<0.000000e+00> : vector<2x32xf32>
    %135 = tpu.matmul %133, %134, %cst_55 {dimension_numbers = #tpu.dot_dimension_numbers<[1], [0], [0], [1], [0, 0, 1, 1], [], []>} : vector<2x32xf32>, vector<32x32xf32>, vector<2x32xf32> -> vector<2x32xf32>
    %c432 = arith.constant 432 : index
    %c0_56 = arith.constant 0 : index
    %136 = vector.load %arg1[%c432, %c0_56] : memref<440x32xf32, #tpu.memory_space<vmem>>, vector<1x32xf32>
    %137 = vector.broadcast %136 : vector<1x32xf32> to vector<2x32xf32>
    %138 = arith.addf %135, %137 : vector<2x32xf32>
    %c0_57 = arith.constant 0 : index
    %c0_58 = arith.constant 0 : index
    %139 = vector.load %arg2[%c0_57, %c0_58] : memref<248x96xf32, #tpu.memory_space<vmem>>, vector<32x96xf32>
    %cst_59 = arith.constant dense<0.000000e+00> : vector<2x96xf32>
    %140 = tpu.matmul %138, %139, %cst_59 {dimension_numbers = #tpu.dot_dimension_numbers<[1], [0], [0], [1], [0, 0, 1, 1], [], []>} : vector<2x32xf32>, vector<32x96xf32>, vector<2x96xf32> -> vector<2x96xf32>
    %c32 = arith.constant 32 : index
    %c0_60 = arith.constant 0 : index
    %141 = vector.load %arg2[%c32, %c0_60] : memref<248x96xf32, #tpu.memory_space<vmem>>, vector<1x96xf32>
    %142 = vector.broadcast %141 : vector<1x96xf32> to vector<2x96xf32>
    %143 = arith.addf %140, %142 : vector<2x96xf32>
    %cst_61 = arith.constant 0.000000e+00 : f32
    %144 = vector.broadcast %cst_61 : f32 to vector<2x96xf32>
    %145 = arith.cmpf ogt, %143, %144 : vector<2x96xf32>
    %cst_62 = arith.constant 0.000000e+00 : f32
    %146 = vector.broadcast %cst_62 : f32 to vector<2x96xf32>
    %147 = arith.minimumf %143, %146 : vector<2x96xf32>
    %148 = math.exp %147 : vector<2x96xf32>
    %cst_63 = arith.constant 1.000000e+00 : f32
    %149 = vector.broadcast %cst_63 : f32 to vector<2x96xf32>
    %150 = arith.subf %148, %149 : vector<2x96xf32>
    %151 = arith.select %145, %143, %150 : vector<2x96xi1>, vector<2x96xf32>
    %c40_64 = arith.constant 40 : index
    %c0_65 = arith.constant 0 : index
    %152 = vector.load %arg2[%c40_64, %c0_65] : memref<248x96xf32, #tpu.memory_space<vmem>>, vector<96x96xf32>
    %cst_66 = arith.constant dense<0.000000e+00> : vector<2x96xf32>
    %153 = tpu.matmul %151, %152, %cst_66 {dimension_numbers = #tpu.dot_dimension_numbers<[1], [0], [0], [1], [0, 0, 1, 1], [], []>} : vector<2x96xf32>, vector<96x96xf32>, vector<2x96xf32> -> vector<2x96xf32>
    %c136_67 = arith.constant 136 : index
    %c0_68 = arith.constant 0 : index
    %154 = vector.load %arg2[%c136_67, %c0_68] : memref<248x96xf32, #tpu.memory_space<vmem>>, vector<1x96xf32>
    %155 = vector.broadcast %154 : vector<1x96xf32> to vector<2x96xf32>
    %156 = arith.addf %153, %155 : vector<2x96xf32>
    %cst_69 = arith.constant 0.000000e+00 : f32
    %157 = vector.broadcast %cst_69 : f32 to vector<2x96xf32>
    %158 = arith.cmpf ogt, %156, %157 : vector<2x96xf32>
    %cst_70 = arith.constant 0.000000e+00 : f32
    %159 = vector.broadcast %cst_70 : f32 to vector<2x96xf32>
    %160 = arith.minimumf %156, %159 : vector<2x96xf32>
    %161 = math.exp %160 : vector<2x96xf32>
    %cst_71 = arith.constant 1.000000e+00 : f32
    %162 = vector.broadcast %cst_71 : f32 to vector<2x96xf32>
    %163 = arith.subf %161, %162 : vector<2x96xf32>
    %164 = arith.select %158, %156, %163 : vector<2x96xi1>, vector<2x96xf32>
    %c144_72 = arith.constant 144 : index
    %c0_73 = arith.constant 0 : index
    %165 = vector.load %arg2[%c144_72, %c0_73] : memref<248x96xf32, #tpu.memory_space<vmem>>, vector<96x48xf32>
    %cst_74 = arith.constant dense<0.000000e+00> : vector<2x48xf32>
    %166 = tpu.matmul %164, %165, %cst_74 {dimension_numbers = #tpu.dot_dimension_numbers<[1], [0], [0], [1], [0, 0, 1, 1], [], []>} : vector<2x96xf32>, vector<96x48xf32>, vector<2x48xf32> -> vector<2x48xf32>
    %c240_75 = arith.constant 240 : index
    %c0_76 = arith.constant 0 : index
    %167 = vector.load %arg2[%c240_75, %c0_76] : memref<248x96xf32, #tpu.memory_space<vmem>>, vector<1x48xf32>
    %168 = vector.broadcast %167 : vector<1x48xf32> to vector<2x48xf32>
    %169 = arith.addf %166, %168 : vector<2x48xf32>
    %cst_77 = arith.constant 0.000000e+00 : f32
    %170 = vector.broadcast %cst_77 : f32 to vector<2x48xf32>
    %171 = arith.maximumf %169, %170 : vector<2x48xf32>
    %172 = math.absf %169 : vector<2x48xf32>
    %cst_78 = arith.constant 0.000000e+00 : f32
    %173 = vector.broadcast %cst_78 : f32 to vector<2x48xf32>
    %174 = arith.subf %173, %172 : vector<2x48xf32>
    %175 = math.exp %174 : vector<2x48xf32>
    %176 = math.log1p %175 : vector<2x48xf32>
    %177 = arith.addf %171, %176 : vector<2x48xf32>
    %cst_79 = arith.constant 9.99999974E-6 : f32
    %178 = vector.broadcast %cst_79 : f32 to vector<2x48xf32>
    %179 = arith.addf %177, %178 : vector<2x48xf32>
    %cst_80 = arith.constant 1.010000e-03 : f32
    %180 = vector.broadcast %cst_80 : f32 to vector<2x48xf32>
    %181 = arith.addf %177, %180 : vector<2x48xf32>
    %182 = tpu.reciprocal %181 {approx = true} : vector<2x48xf32> -> vector<2x48xf32>
    %183 = tpu.iota {dimensions = array<i32: 1>} : vector<2x48xi32>
    %c12_i32 = arith.constant 12 : i32
    %184 = vector.broadcast %c12_i32 : i32 to vector<2x48xi32>
    %185 = arith.cmpi slt, %183, %184 : vector<2x48xi32>
    %c24_i32 = arith.constant 24 : i32
    %186 = vector.broadcast %c24_i32 : i32 to vector<2x48xi32>
    %187 = arith.cmpi slt, %183, %186 : vector<2x48xi32>
    %188 = arith.select %187, %177, %182 : vector<2x48xi1>, vector<2x48xf32>
    %189 = arith.select %185, %179, %188 : vector<2x48xi1>, vector<2x48xf32>
    %c0_81 = arith.constant 0 : index
    %c0_82 = arith.constant 0 : index
    %190 = vector.load %arg3[%c0_81, %c0_82] : memref<2x48xf32, #tpu.memory_space<vmem>>, vector<2x48xf32>
    tpu.vector_store %arg3[%c0_81, %c0_82], %189 {strides = array<i32>} : memref<2x48xf32, #tpu.memory_space<vmem>>, vector<2x48xf32>,
    return
  }
}

</mosaic_0001>

<llo_original>
// kernel: deepstpp_forward.1
$region0: #{deepstpp_forward.1}
  #allocation0 [shape = 'u32[]', space=smem, size = 0x4, offset = 0x4, fixed_abs, tag = 'smem constant byte address 0x4 - core index']
  #allocation1 [shape = 'u32[144,128]{1,0:T(1,128)}', space=vmem, size = 0x12000, scoped, tag = 'internal scratch']
  %s0 = inlined_call_operand.vmem [shape: f32[16,35], index: 0, kind: input, shape index: {}]
  %s1 = inlined_call_operand.vmem [shape: f32[440,32], index: 1, kind: input, shape index: {}]
  %s2 = inlined_call_operand.vmem [shape: f32[248,96], index: 2, kind: input, shape index: {}]
  %s3 = inlined_call_operand.vmem [shape: f32[2,48], index: 3, kind: output, shape index: {}]
  %s4 = sld [smem:[#allocation0]]
  $region22: #{deepstpp_forward.1} parent=0
    _
  %s6 = ssub.s32 1, %s4
  %s7 = scalar_select 0, %s6, %s4
  // Predicated region
  $region2: #{deepstpp_forward.1} parent=0 // pred_check
    _
  $region3: #{deepstpp_forward.1} parent=0 // pred_check_branch
    %9 = sbr.rel (0) target = $region5
  $region4: #{deepstpp_forward.1} parent=0 // pred_region
    _
  $region5: #{deepstpp_forward.1} parent=0 // pred_fallthru
    _
  // Predicated region
  $region6: #{deepstpp_forward.1} parent=0 // pred_check
    _
  $region7: #{deepstpp_forward.1} parent=0 // pred_check_branch
    %11 = sbr.rel (0) target = $region9
  $region8: #{deepstpp_forward.1} parent=0 // pred_region
    _
  $region9: #{deepstpp_forward.1} parent=0 // pred_fallthru
    _
  // Predicated region
  $region10: #{deepstpp_forward.1} parent=0 // pred_check
    _
  $region11: #{deepstpp_forward.1} parent=0 // pred_check_branch
    %13 = sbr.rel (0) target = $region13
  $region12: #{deepstpp_forward.1} parent=0 // pred_region
    _
  $region13: #{deepstpp_forward.1} parent=0 // pred_fallthru
    _
  %v14 = vld [vmem:[%s0] sm:$0xff]
  %v15 = vld [vmem:[%s0 + $0x8] sm:$0xff]
  %v16 = vld [vmem:[%s1] sm:$0xff]
  %v17 = vld [vmem:[%s1 + $0x8] sm:$0xff]
  %v18 = vld [vmem:[%s1 + $0x10] sm:$0xff]
  %v19 = vld [vmem:[%s1 + $0x18] sm:$0xff]
  %v20 = vld [vmem:[%s1 + $0x20] sm:$0x7]
  %vm21 = vcmask 285696
  %v23 = vsel %vm21, %v14, 0
  %v26 = vsel %vm21, %v15, 0
  %vm28 = vcmask 1042432
  %v30 = vsel %vm28, %v20, 0
  %32 = vmatprep.subr.mxu0 0.0
  %33 = vmatpush1.msra.mxu0 %v16
  %34 = vmatprep.subr.mxu0 0.0
  %35 = vmatpush1.msra.mxu0 %v17
  %36 = vmatprep.subr.mxu0 0.0
  %37 = vmatpush1.msra.mxu0 %v18
  %38 = vmatprep.subr.mxu0 0.0
  %39 = vmatpush1.msra.mxu0 %v19
  %40 = vmatprep.subr.mxu0 0.0
  %41 = vmatpush1.msra.mxu0 %v30
  %42 = vmatprep.subr.mxu0 0.0
  %43 = vmatpush1.msra.mxu0 0.0
  %44 = vmatprep.subr.mxu0 0.0
  %45 = vmatpush1.msra.mxu0 0.0
  %46 = vmatprep.subr.mxu0 0.0
  %47 = vmatpush1.msra.mxu0 0.0
  %48 = vmatprep.subr.mxu0 0.0
  %49 = vmatpush1.msra.mxu0 0.0
  %50 = vmatprep.subr.mxu0 0.0
  %51 = vmatpush1.msra.mxu0 0.0
  %52 = vmatprep.subr.mxu0 0.0
  %53 = vmatpush1.msra.mxu0 0.0
  %54 = vmatprep.subr.mxu0 0.0
  %55 = vmatpush1.msra.mxu0 0.0
  %56 = vmatprep.subr.mxu0 0.0
  %57 = vmatpush1.msra.mxu0 0.0
  %58 = vmatprep.subr.mxu0 0.0
  %59 = vmatpush1.msra.mxu0 0.0
  %60 = vmatprep.subr.mxu0 0.0
  %61 = vmatpush1.msra.mxu0 0.0
  %62 = vmatprep.subr.mxu0 0.0
  %63 = vmatpush1.msra.mxu0 0.0
  %64 = vmatprep.subr.mxu0 0.0
  %65 = vmatpush1.msra.mxu0 0.0
  %66 = vmatprep.subr.mxu0 0.0
  %67 = vmatpush1.msra.mxu0 0.0
  %68 = vmatprep.subr.mxu0 0.0
  %69 = vmatpush1.msra.mxu0 0.0
  %70 = vmatprep.subr.mxu0 0.0
  %71 = vmatpush1.msra.mxu0 0.0
  %72 = vmatprep.subr.mxu0 0.0
  %73 = vmatpush1.msra.mxu0 0.0
  %74 = vmatprep.subr.mxu0 0.0
  %75 = vmatpush1.msra.mxu0 0.0
  %76 = vmatprep.subr.mxu0 0.0
  %77 = vmatpush1.msra.mxu0 0.0
  %78 = vmatprep.subr.mxu0 0.0
  %79 = vmatpush1.msra.mxu0 0.0
  %80 = vmatprep.subr.mxu0 0.0
  %81 = vmatpush1.msra.mxu0 0.0
  %82 = vmatprep.subr.mxu0 0.0
  %83 = vmatpush1.msra.mxu0 0.0
  %84 = vmatprep.subr.mxu0 0.0
  %85 = vmatpush1.msra.mxu0 0.0
  %86 = vmatprep.subr.mxu0 0.0
  %87 = vmatpush1.msra.mxu0 0.0
  %88 = vmatprep.subr.mxu0 0.0
  %89 = vmatpush1.msra.mxu0 0.0
  %90 = vmatprep.subr.mxu0 0.0
  %91 = vmatpush1.msra.mxu0 0.0
  %92 = vmatprep.subr.mxu0 0.0
  %93 = vmatpush1.msra.mxu0 0.0
  %94 = vmatprep.subr.mxu0 0.0
  %95 = vmatpush1.msra.mxu0 0.0
  %96 = vmatprep.mubr.f32.mxu0 0.0
  %97 = vmatmul.mubr.f32.gmra.mrb[0].mxu0 %v23
  %v98 = vpop.f32.mrb[0].mxu0
  %v99 = vadd.f32 0.0, %v98
  %v100 = vpop.f32.mrb[0].mxu0
  %101 = vmatprep.mubr.f32.mxu0 0.0
  %102 = vmatmul.mubr.f32.gmra.mrb[0].mxu0 %v26
  %v103 = vpop.f32.mrb[0].mxu0
  %v104 = vadd.f32 0.0, %v103
  %v105 = vpop.f32.mrb[0].mxu0
  %106 = vdwg.mxu0
  %v107 = vlaneseq
  %v108 = vshrl.u32 %v107, 7
  %v109 = vadd.s32 %v108, 8
  %v110 = vadd.s32 %v108, 16
  %v111 = vadd.s32 %v108, 24
  %v112 = vlaneseq
  %v113 = vand.u32 %v112, 127
  %v114 = vcvt.s32.f32 %v108
  %v115 = vcvt.s32.f32 %v109
  %v116 = vcvt.s32.f32 %v110
  %v117 = vcvt.s32.f32 %v111
  %v118 = vadd.f32 %v114, 0.5
  %v119 = vadd.f32 %v115, 0.5
  %v120 = vadd.f32 %v116, 0.5
  %v121 = vadd.f32 %v117, 0.5
  %v122 = vmul.f32 %v118, 0.125
  %v123 = vmul.f32 %v119, 0.125
  %v124 = vmul.f32 %v120, 0.125
  %v125 = vmul.f32 %v121, 0.125
  %v126 = vfloor.f32 %v122
  %v127 = vfloor.f32 %v123
  %v128 = vfloor.f32 %v124
  %v129 = vfloor.f32 %v125
  %v130 = vcvt.s32.f32 %v113
  %v131 = vadd.f32 %v130, 0.5
  %v132 = vmul.f32 %v131, 0.125
  %v133 = vfloor.f32 %v132
  %vm134 = vcmp.eq.f32.partialorder %v126, %v133
  %vm135 = vcmp.eq.f32.partialorder %v127, %v133
  %vm136 = vcmp.eq.f32.partialorder %v128, %v133
  %vm137 = vcmp.eq.f32.partialorder %v129, %v133
  %vm138 = vcmp.le.s32.totalorder %v113, %v108
  %vm139 = vcmp.le.s32.totalorder %v113, %v109
  %vm140 = vcmp.le.s32.totalorder %v113, %v110
  %vm141 = vcmp.le.s32.totalorder %v113, %v111
  %vm142 = vmand %vm134, %vm138
  %vm143 = vmand %vm135, %vm139
  %vm144 = vmand %vm136, %vm140
  %vm145 = vmand %vm137, %vm141
  %v146 = vsel %vm142, 0.0, -1e+30
  %v147 = vsel %vm143, 0.0, -1e+30
  %v148 = vsel %vm144, 0.0, -1e+30
  %v149 = vsel %vm145, 0.0, -1e+30
  %v150 = vld [vmem:[%s1 + $0x28] sm:$0xff]
  %v151 = vld [vmem:[%s1 + $0x30] sm:$0xff]
  %v152 = vld [vmem:[%s1 + $0x38] sm:$0xff]
  %v153 = vld [vmem:[%s1 + $0x40] sm:$0xff]
  %v154 = vld [vmem:[%s1 + $0x88] sm:$0x1]
  %v155 = vlaneseq
  %v156 = vshrl.u32 %v155, 7
  %v157 = vsub.s32 0, %v156
  %v158 = vrot.slane %v154, %v157
  %vm159 = vcmask 261120
  %v161 = vsel %vm159, %v99, 0
  %v164 = vsel %vm159, %v104, 0
  %166 = vmatprep.subr.mxu0 0.0
  %167 = vmatpush1.msra.mxu0 %v150
  %168 = vmatprep.subr.mxu0 0.0
  %169 = vmatpush1.msra.mxu0 %v151
  %170 = vmatprep.subr.mxu0 0.0
  %171 = vmatpush1.msra.mxu0 %v152
  %172 = vmatprep.subr.mxu0 0.0
  %173 = vmatpush1.msra.mxu0 %v153
  %174 = vmatprep.subr.mxu0 0.0
  %175 = vmatpush1.msra.mxu0 0.0
  %176 = vmatprep.subr.mxu0 0.0
  %177 = vmatpush1.msra.mxu0 0.0
  %178 = vmatprep.subr.mxu0 0.0
  %179 = vmatpush1.msra.mxu0 0.0
  %180 = vmatprep.subr.mxu0 0.0
  %181 = vmatpush1.msra.mxu0 0.0
  %182 = vmatprep.subr.mxu0 0.0
  %183 = vmatpush1.msra.mxu0 0.0
  %184 = vmatprep.subr.mxu0 0.0
  %185 = vmatpush1.msra.mxu0 0.0
  %186 = vmatprep.subr.mxu0 0.0
  %187 = vmatpush1.msra.mxu0 0.0
  %188 = vmatprep.subr.mxu0 0.0
  %189 = vmatpush1.msra.mxu0 0.0
  %190 = vmatprep.subr.mxu0 0.0
  %191 = vmatpush1.msra.mxu0 0.0
  %192 = vmatprep.subr.mxu0 0.0
  %193 = vmatpush1.msra.mxu0 0.0
  %194 = vmatprep.subr.mxu0 0.0
  %195 = vmatpush1.msra.mxu0 0.0
  %196 = vmatprep.subr.mxu0 0.0
  %197 = vmatpush1.msra.mxu0 0.0
  %198 = vmatprep.subr.mxu0 0.0
  %199 = vmatpush1.msra.mxu0 0.0
  %200 = vmatprep.subr.mxu0 0.0
  %201 = vmatpush1.msra.mxu0 0.0
  %202 = vmatprep.subr.mxu0 0.0
  %203 = vmatpush1.msra.mxu0 0.0
  %204 = vmatprep.subr.mxu0 0.0
  %205 = vmatpush1.msra.mxu0 0.0
  %206 = vmatprep.subr.mxu0 0.0
  %207 = vmatpush1.msra.mxu0 0.0
  %208 = vmatprep.subr.mxu0 0.0
  %209 = vmatpush1.msra.mxu0 0.0
  %210 = vmatprep.subr.mxu0 0.0
  %211 = vmatpush1.msra.mxu0 0.0
  %212 = vmatprep.subr.mxu0 0.0
  %213 = vmatpush1.msra.mxu0 0.0
  %214 = vmatprep.subr.mxu0 0.0
  %215 = vmatpush1.msra.mxu0 0.0
  %216 = vmatprep.subr.mxu0 0.0
  %217 = vmatpush1.msra.mxu0 0.0
  %218 = vmatprep.subr.mxu0 0.0
  %219 = vmatpush1.msra.mxu0 0.0
  %220 = vmatprep.subr.mxu0 0.0
  %221 = vmatpush1.msra.mxu0 0.0
  %222 = vmatprep.subr.mxu0 0.0
  %223 = vmatpush1.msra.mxu0 0.0
  %224 = vmatprep.subr.mxu0 0.0
  %225 = vmatpush1.msra.mxu0 0.0
  %226 = vmatprep.subr.mxu0 0.0
  %227 = vmatpush1.msra.mxu0 0.0
  %228 = vmatprep.subr.mxu0 0.0
  %229 = vmatpush1.msra.mxu0 0.0
  %230 = vmatprep.mubr.f32.mxu0 0.0
  %231 = vmatmul.mubr.f32.gmra.mrb[0].mxu0 %v161
  %v232 = vpop.f32.mrb[0].mxu0
  %v233 = vadd.f32 %v158, %v232
  %v234 = vpop.f32.mrb[0].mxu0
  %235 = vmatprep.mubr.f32.mxu0 0.0
  %236 = vmatmul.mubr.f32.gmra.mrb[0].mxu0 %v164
  %v237 = vpop.f32.mrb[0].mxu0
  %v238 = vadd.f32 %v158, %v237
  %v239 = vpop.f32.mrb[0].mxu0
  %240 = vdwg.mxu0
  %v241 = vld [vmem:[%s1 + $0x48] sm:$0xff]
  %v242 = vld [vmem:[%s1 + $0x50] sm:$0xff]
  %v243 = vld [vmem:[%s1 + $0x58] sm:$0xff]
  %v244 = vld [vmem:[%s1 + $0x60] sm:$0xff]
  %245 = vmatprep.subr.mxu0 0.0
  %246 = vmatpush1.msra.mxu0 %v241
  %247 = vmatprep.subr.mxu0 0.0
  %248 = vmatpush1.msra.mxu0 %v242
  %249 = vmatprep.subr.mxu0 0.0
  %250 = vmatpush1.msra.mxu0 %v243
  %251 = vmatprep.subr.mxu0 0.0
  %252 = vmatpush1.msra.mxu0 %v244
  %253 = vmatprep.subr.mxu0 0.0
  %254 = vmatpush1.msra.mxu0 0.0
  %255 = vmatprep.subr.mxu0 0.0
  %256 = vmatpush1.msra.mxu0 0.0
  %257 = vmatprep.subr.mxu0 0.0
  %258 = vmatpush1.msra.mxu0 0.0
  %259 = vmatprep.subr.mxu0 0.0
  %260 = vmatpush1.msra.mxu0 0.0
  %261 = vmatprep.subr.mxu0 0.0
  %262 = vmatpush1.msra.mxu0 0.0
  %263 = vmatprep.subr.mxu0 0.0
  %264 = vmatpush1.msra.mxu0 0.0
  %265 = vmatprep.subr.mxu0 0.0
  %266 = vmatpush1.msra.mxu0 0.0
  %267 = vmatprep.subr.mxu0 0.0
  %268 = vmatpush1.msra.mxu0 0.0
  %269 = vmatprep.subr.mxu0 0.0
  %270 = vmatpush1.msra.mxu0 0.0
  %271 = vmatprep.subr.mxu0 0.0
  %272 = vmatpush1.msra.mxu0 0.0
  %273 = vmatprep.subr.mxu0 0.0
  %274 = vmatpush1.msra.mxu0 0.0
  %275 = vmatprep.subr.mxu0 0.0
  %276 = vmatpush1.msra.mxu0 0.0
  %277 = vmatprep.subr.mxu0 0.0
  %278 = vmatpush1.msra.mxu0 0.0
  %279 = vmatprep.subr.mxu0 0.0
  %280 = vmatpush1.msra.mxu0 0.0
  %281 = vmatprep.subr.mxu0 0.0
  %282 = vmatpush1.msra.mxu0 0.0
  %283 = vmatprep.subr.mxu0 0.0
  %284 = vmatpush1.msra.mxu0 0.0
  %285 = vmatprep.subr.mxu0 0.0
  %286 = vmatpush1.msra.mxu0 0.0
  %287 = vmatprep.subr.mxu0 0.0
  %288 = vmatpush1.msra.mxu0 0.0
  %289 = vmatprep.subr.mxu0 0.0
  %290 = vmatpush1.msra.mxu0 0.0
  %291 = vmatprep.subr.mxu0 0.0
  %292 = vmatpush1.msra.mxu0 0.0
  %293 = vmatprep.subr.mxu0 0.0
  %294 = vmatpush1.msra.mxu0 0.0
  %295 = vmatprep.subr.mxu0 0.0
  %296 = vmatpush1.msra.mxu0 0.0
  %297 = vmatprep.subr.mxu0 0.0
  %298 = vmatpush1.msra.mxu0 0.0
  %299 = vmatprep.subr.mxu0 0.0
  %300 = vmatpush1.msra.mxu0 0.0
  %301 = vmatprep.subr.mxu0 0.0
  %302 = vmatpush1.msra.mxu0 0.0
  %303 = vmatprep.subr.mxu0 0.0
  %304 = vmatpush1.msra.mxu0 0.0
  %305 = vmatprep.subr.mxu0 0.0
  %306 = vmatpush1.msra.mxu0 0.0
  %307 = vmatprep.subr.mxu0 0.0
  %308 = vmatpush1.msra.mxu0 0.0
  %309 = vmatprep.mubr.f32.mxu0 0.0
  %310 = vmatmul.mubr.f32.gmra.mrb[0].mxu0 %v161
  %v311 = vpop.f32.mrb[0].mxu0
  %v312 = vadd.f32 0.0, %v311
  %v313 = vpop.f32.mrb[0].mxu0
  %314 = vmatprep.mubr.f32.mxu0 0.0
  %315 = vmatmul.mubr.f32.gmra.mrb[0].mxu0 %v164
  %v316 = vpop.f32.mrb[0].mxu0
  %v317 = vadd.f32 0.0, %v316
  %v318 = vpop.f32.mrb[0].mxu0
  %319 = vdwg.mxu0
  %v320 = vld [vmem:[%s1 + $0x68] sm:$0xff]
  %v321 = vld [vmem:[%s1 + $0x70] sm:$0xff]
  %v322 = vld [vmem:[%s1 + $0x78] sm:$0xff]
  %v323 = vld [vmem:[%s1 + $0x80] sm:$0xff]
  %324 = vmatprep.subr.mxu0 0.0
  %325 = vmatpush1.msra.mxu0 %v320
  %326 = vmatprep.subr.mxu0 0.0
  %327 = vmatpush1.msra.mxu0 %v321
  %328 = vmatprep.subr.mxu0 0.0
  %329 = vmatpush1.msra.mxu0 %v322
  %330 = vmatprep.subr.mxu0 0.0
  %331 = vmatpush1.msra.mxu0 %v323
  %332 = vmatprep.subr.mxu0 0.0
  %333 = vmatpush1.msra.mxu0 0.0
  %334 = vmatprep.subr.mxu0 0.0
  %335 = vmatpush1.msra.mxu0 0.0
  %336 = vmatprep.subr.mxu0 0.0
  %337 = vmatpush1.msra.mxu0 0.0
  %338 = vmatprep.subr.mxu0 0.0
  %339 = vmatpush1.msra.mxu0 0.0
  %340 = vmatprep.subr.mxu0 0.0
  %341 = vmatpush1.msra.mxu0 0.0
  %342 = vmatprep.subr.mxu0 0.0
  %343 = vmatpush1.msra.mxu0 0.0
  %344 = vmatprep.subr.mxu0 0.0
  %345 = vmatpush1.msra.mxu0 0.0
  %346 = vmatprep.subr.mxu0 0.0
  %347 = vmatpush1.msra.mxu0 0.0
  %348 = vmatprep.subr.mxu0 0.0
  %349 = vmatpush1.msra.mxu0 0.0
  %350 = vmatprep.subr.mxu0 0.0
  %351 = vmatpush1.msra.mxu0 0.0
  %352 = vmatprep.subr.mxu0 0.0
  %353 = vmatpush1.msra.mxu0 0.0
  %354 = vmatprep.subr.mxu0 0.0
  %355 = vmatpush1.msra.mxu0 0.0
  %356 = vmatprep.subr.mxu0 0.0
  %357 = vmatpush1.msra.mxu0 0.0
  %358 = vmatprep.subr.mxu0 0.0
  %359 = vmatpush1.msra.mxu0 0.0
  %360 = vmatprep.subr.mxu0 0.0
  %361 = vmatpush1.msra.mxu0 0.0
  %362 = vmatprep.subr.mxu0 0.0
  %363 = vmatpush1.msra.mxu0 0.0
  %364 = vmatprep.subr.mxu0 0.0
  %365 = vmatpush1.msra.mxu0 0.0
  %366 = vmatprep.subr.mxu0 0.0
  %367 = vmatpush1.msra.mxu0 0.0
  %368 = vmatprep.subr.mxu0 0.0
  %369 = vmatpush1.msra.mxu0 0.0
  %370 = vmatprep.subr.mxu0 0.0
  %371 = vmatpush1.msra.mxu0 0.0
  %372 = vmatprep.subr.mxu0 0.0
  %373 = vmatpush1.msra.mxu0 0.0
  %374 = vmatprep.subr.mxu0 0.0
  %375 = vmatpush1.msra.mxu0 0.0
  %376 = vmatprep.subr.mxu0 0.0
  %377 = vmatpush1.msra.mxu0 0.0
  %378 = vmatprep.subr.mxu0 0.0
  %379 = vmatpush1.msra.mxu0 0.0
  %380 = vmatprep.subr.mxu0 0.0
  %381 = vmatpush1.msra.mxu0 0.0
  %382 = vmatprep.subr.mxu0 0.0
  %383 = vmatpush1.msra.mxu0 0.0
  %384 = vmatprep.subr.mxu0 0.0
  %385 = vmatpush1.msra.mxu0 0.0
  %386 = vmatprep.subr.mxu0 0.0
  %387 = vmatpush1.msra.mxu0 0.0
  %388 = vmatprep.mubr.f32.mxu0 0.0
  %389 = vmatmul.mubr.f32.gmra.mrb[0].mxu0 %v161
  %v390 = vpop.f32.mrb[0].mxu0
  %v391 = vadd.f32 0.0, %v390
  %v392 = vpop.f32.mrb[0].mxu0
  %393 = vmatprep.mubr.f32.mxu0 0.0
  %394 = vmatmul.mubr.f32.gmra.mrb[0].mxu0 %v164
  %v395 = vpop.f32.mrb[0].mxu0
  %v396 = vadd.f32 0.0, %v395
  %v397 = vpop.f32.mrb[0].mxu0
  %398 = vdwg.mxu0
  %v399 = vld [vmem:[%s1 + $0x90] sm:$0xff]
  %v400 = vld [vmem:[%s1 + $0x98] sm:$0xff]
  %v401 = vld [vmem:[%s1 + $0xa0] sm:$0xff]
  %v402 = vld [vmem:[%s1 + $0xa8] sm:$0xff]
  %v403 = vld [vmem:[%s1 + $0xf0] sm:$0x1]
  %v404 = vlaneseq
  %v405 = vshrl.u32 %v404, 7
  %v406 = vsub.s32 0, %v405
  %v407 = vrot.slane %v403, %v406
  %408 = vmatprep.subr.mxu0 0.0
  %409 = vmatpush1.msra.mxu0 %v399
  %410 = vmatprep.subr.mxu0 0.0
  %411 = vmatpush1.msra.mxu0 %v400
  %412 = vmatprep.subr.mxu0 0.0
  %413 = vmatpush1.msra.mxu0 %v401
  %414 = vmatprep.subr.mxu0 0.0
  %415 = vmatpush1.msra.mxu0 %v402
  %416 = vmatprep.subr.mxu0 0.0
  %417 = vmatpush1.msra.mxu0 0.0
  %418 = vmatprep.subr.mxu0 0.0
  %419 = vmatpush1.msra.mxu0 0.0
  %420 = vmatprep.subr.mxu0 0.0
  %421 = vmatpush1.msra.mxu0 0.0
  %422 = vmatprep.subr.mxu0 0.0
  %423 = vmatpush1.msra.mxu0 0.0
  %424 = vmatprep.subr.mxu0 0.0
  %425 = vmatpush1.msra.mxu0 0.0
  %426 = vmatprep.subr.mxu0 0.0
  %427 = vmatpush1.msra.mxu0 0.0
  %428 = vmatprep.subr.mxu0 0.0
  %429 = vmatpush1.msra.mxu0 0.0
  %430 = vmatprep.subr.mxu0 0.0
  %431 = vmatpush1.msra.mxu0 0.0
  %432 = vmatprep.subr.mxu0 0.0
  %433 = vmatpush1.msra.mxu0 0.0
  %434 = vmatprep.subr.mxu0 0.0
  %435 = vmatpush1.msra.mxu0 0.0
  %436 = vmatprep.subr.mxu0 0.0
  %437 = vmatpush1.msra.mxu0 0.0
  %438 = vmatprep.subr.mxu0 0.0
  %439 = vmatpush1.msra.mxu0 0.0
  %440 = vmatprep.subr.mxu0 0.0
  %441 = vmatpush1.msra.mxu0 0.0
  %442 = vmatprep.subr.mxu0 0.0
  %443 = vmatpush1.msra.mxu0 0.0
  %444 = vmatprep.subr.mxu0 0.0
  %445 = vmatpush1.msra.mxu0 0.0
  %446 = vmatprep.subr.mxu0 0.0
  %447 = vmatpush1.msra.mxu0 0.0
  %448 = vmatprep.subr.mxu0 0.0
  %449 = vmatpush1.msra.mxu0 0.0
  %450 = vmatprep.subr.mxu0 0.0
  %451 = vmatpush1.msra.mxu0 0.0
  %452 = vmatprep.subr.mxu0 0.0
  %453 = vmatpush1.msra.mxu0 0.0
  %454 = vmatprep.subr.mxu0 0.0
  %455 = vmatpush1.msra.mxu0 0.0
  %456 = vmatprep.subr.mxu0 0.0
  %457 = vmatpush1.msra.mxu0 0.0
  %458 = vmatprep.subr.mxu0 0.0
  %459 = vmatpush1.msra.mxu0 0.0
  %460 = vmatprep.subr.mxu0 0.0
  %461 = vmatpush1.msra.mxu0 0.0
  %462 = vmatprep.subr.mxu0 0.0
  %463 = vmatpush1.msra.mxu0 0.0
  %464 = vmatprep.subr.mxu0 0.0
  %465 = vmatpush1.msra.mxu0 0.0
  %466 = vmatprep.subr.mxu0 0.0
  %467 = vmatpush1.msra.mxu0 0.0
  %468 = vmatprep.subr.mxu0 0.0
  %469 = vmatpush1.msra.mxu0 0.0
  %470 = vmatprep.subr.mxu0 0.0
  %471 = vmatpush1.msra.mxu0 0.0
  %472 = vmatprep.mubr.f32.mxu0 0.0
  %473 = vmatmul.mubr.f32.gmra.mrb[0].mxu0 %v161
  %v474 = vpop.f32.mrb[0].mxu0
  %v475 = vadd.f32 %v407, %v474
  %v476 = vpop.f32.mrb[0].mxu0
  %477 = vmatprep.mubr.f32.mxu0 0.0
  %478 = vmatmul.mubr.f32.gmra.mrb[0].mxu0 %v164
  %v479 = vpop.f32.mrb[0].mxu0
  %v480 = vadd.f32 %v407, %v479
  %v481 = vpop.f32.mrb[0].mxu0
  %482 = vdwg.mxu0
  %v483 = vld [vmem:[%s1 + $0xb0] sm:$0xff]
  %v484 = vld [vmem:[%s1 + $0xb8] sm:$0xff]
  %v485 = vld [vmem:[%s1 + $0xc0] sm:$0xff]
  %v486 = vld [vmem:[%s1 + $0xc8] sm:$0xff]
  %487 = vmatprep.subr.mxu0 0.0
  %488 = vmatpush1.msra.mxu0 %v483
  %489 = vmatprep.subr.mxu0 0.0
  %490 = vmatpush1.msra.mxu0 %v484
  %491 = vmatprep.subr.mxu0 0.0
  %492 = vmatpush1.msra.mxu0 %v485
  %493 = vmatprep.subr.mxu0 0.0
  %494 = vmatpush1.msra.mxu0 %v486
  %495 = vmatprep.subr.mxu0 0.0
  %496 = vmatpush1.msra.mxu0 0.0
  %497 = vmatprep.subr.mxu0 0.0
  %498 = vmatpush1.msra.mxu0 0.0
  %499 = vmatprep.subr.mxu0 0.0
  %500 = vmatpush1.msra.mxu0 0.0
  %501 = vmatprep.subr.mxu0 0.0
  %502 = vmatpush1.msra.mxu0 0.0
  %503 = vmatprep.subr.mxu0 0.0
  %504 = vmatpush1.msra.mxu0 0.0
  %505 = vmatprep.subr.mxu0 0.0
  %506 = vmatpush1.msra.mxu0 0.0
  %507 = vmatprep.subr.mxu0 0.0
  %508 = vmatpush1.msra.mxu0 0.0
  %509 = vmatprep.subr.mxu0 0.0
  %510 = vmatpush1.msra.mxu0 0.0
  %511 = vmatprep.subr.mxu0 0.0
  %512 = vmatpush1.msra.mxu0 0.0
  %513 = vmatprep.subr.mxu0 0.0
  %514 = vmatpush1.msra.mxu0 0.0
  %515 = vmatprep.subr.mxu0 0.0
  %516 = vmatpush1.msra.mxu0 0.0
  %517 = vmatprep.subr.mxu0 0.0
  %518 = vmatpush1.msra.mxu0 0.0
  %519 = vmatprep.subr.mxu0 0.0
  %520 = vmatpush1.msra.mxu0 0.0
  %521 = vmatprep.subr.mxu0 0.0
  %522 = vmatpush1.msra.mxu0 0.0
  %523 = vmatprep.subr.mxu0 0.0
  %524 = vmatpush1.msra.mxu0 0.0
  %525 = vmatprep.subr.mxu0 0.0
  %526 = vmatpush1.msra.mxu0 0.0
  %527 = vmatprep.subr.mxu0 0.0
  %528 = vmatpush1.msra.mxu0 0.0
  %529 = vmatprep.subr.mxu0 0.0
  %530 = vmatpush1.msra.mxu0 0.0
  %531 = vmatprep.subr.mxu0 0.0
  %532 = vmatpush1.msra.mxu0 0.0
  %533 = vmatprep.subr.mxu0 0.0
  %534 = vmatpush1.msra.mxu0 0.0
  %535 = vmatprep.subr.mxu0 0.0
  %536 = vmatpush1.msra.mxu0 0.0
  %537 = vmatprep.subr.mxu0 0.0
  %538 = vmatpush1.msra.mxu0 0.0
  %539 = vmatprep.subr.mxu0 0.0
  %540 = vmatpush1.msra.mxu0 0.0
  %541 = vmatprep.subr.mxu0 0.0
  %542 = vmatpush1.msra.mxu0 0.0
  %543 = vmatprep.subr.mxu0 0.0
  %544 = vmatpush1.msra.mxu0 0.0
  %545 = vmatprep.subr.mxu0 0.0
  %546 = vmatpush1.msra.mxu0 0.0
  %547 = vmatprep.subr.mxu0 0.0
  %548 = vmatpush1.msra.mxu0 0.0
  %549 = vmatprep.subr.mxu0 0.0
  %550 = vmatpush1.msra.mxu0 0.0
  %551 = vmatprep.mubr.f32.mxu0 0.0
  %552 = vmatmul.mubr.f32.gmra.mrb[0].mxu0 %v161
  %v553 = vpop.f32.mrb[0].mxu0
  %v554 = vadd.f32 0.0, %v553
  %v555 = vpop.f32.mrb[0].mxu0
  %556 = vmatprep.mubr.f32.mxu0 0.0
  %557 = vmatmul.mubr.f32.gmra.mrb[0].mxu0 %v164
  %v558 = vpop.f32.mrb[0].mxu0
  %v559 = vadd.f32 0.0, %v558
  %v560 = vpop.f32.mrb[0].mxu0
  %561 = vdwg.mxu0
  %v562 = vld [vmem:[%s1 + $0xd0] sm:$0xff]
  %v563 = vld [vmem:[%s1 + $0xd8] sm:$0xff]
  %v564 = vld [vmem:[%s1 + $0xe0] sm:$0xff]
  %v565 = vld [vmem:[%s1 + $0xe8] sm:$0xff]
  %566 = vmatprep.subr.mxu0 0.0
  %567 = vmatpush1.msra.mxu0 %v562
  %568 = vmatprep.subr.mxu0 0.0
  %569 = vmatpush1.msra.mxu0 %v563
  %570 = vmatprep.subr.mxu0 0.0
  %571 = vmatpush1.msra.mxu0 %v564
  %572 = vmatprep.subr.mxu0 0.0
  %573 = vmatpush1.msra.mxu0 %v565
  %574 = vmatprep.subr.mxu0 0.0
  %575 = vmatpush1.msra.mxu0 0.0
  %576 = vmatprep.subr.mxu0 0.0
  %577 = vmatpush1.msra.mxu0 0.0
  %578 = vmatprep.subr.mxu0 0.0
  %579 = vmatpush1.msra.mxu0 0.0
  %580 = vmatprep.subr.mxu0 0.0
  %581 = vmatpush1.msra.mxu0 0.0
  %582 = vmatprep.subr.mxu0 0.0
  %583 = vmatpush1.msra.mxu0 0.0
  %584 = vmatprep.subr.mxu0 0.0
  %585 = vmatpush1.msra.mxu0 0.0
  %586 = vmatprep.subr.mxu0 0.0
  %587 = vmatpush1.msra.mxu0 0.0
  %588 = vmatprep.subr.mxu0 0.0
  %589 = vmatpush1.msra.mxu0 0.0
  %590 = vmatprep.subr.mxu0 0.0
  %591 = vmatpush1.msra.mxu0 0.0
  %592 = vmatprep.subr.mxu0 0.0
  %593 = vmatpush1.msra.mxu0 0.0
  %594 = vmatprep.subr.mxu0 0.0
  %595 = vmatpush1.msra.mxu0 0.0
  %596 = vmatprep.subr.mxu0 0.0
  %597 = vmatpush1.msra.mxu0 0.0
  %598 = vmatprep.subr.mxu0 0.0
  %599 = vmatpush1.msra.mxu0 0.0
  %600 = vmatprep.subr.mxu0 0.0
  %601 = vmatpush1.msra.mxu0 0.0
  %602 = vmatprep.subr.mxu0 0.0
  %603 = vmatpush1.msra.mxu0 0.0
  %604 = vmatprep.subr.mxu0 0.0
  %605 = vmatpush1.msra.mxu0 0.0
  %606 = vmatprep.subr.mxu0 0.0
  %607 = vmatpush1.msra.mxu0 0.0
  %608 = vmatprep.subr.mxu0 0.0
  %609 = vmatpush1.msra.mxu0 0.0
  %610 = vmatprep.subr.mxu0 0.0
  %611 = vmatpush1.msra.mxu0 0.0
  %612 = vmatprep.subr.mxu0 0.0
  %613 = vmatpush1.msra.mxu0 0.0
  %614 = vmatprep.subr.mxu0 0.0
  %615 = vmatpush1.msra.mxu0 0.0
  %616 = vmatprep.subr.mxu0 0.0
  %617 = vmatpush1.msra.mxu0 0.0
  %618 = vmatprep.subr.mxu0 0.0
  %619 = vmatpush1.msra.mxu0 0.0
  %620 = vmatprep.subr.mxu0 0.0
  %621 = vmatpush1.msra.mxu0 0.0
  %622 = vmatprep.subr.mxu0 0.0
  %623 = vmatpush1.msra.mxu0 0.0
  %624 = vmatprep.subr.mxu0 0.0
  %625 = vmatpush1.msra.mxu0 0.0
  %626 = vmatprep.subr.mxu0 0.0
  %627 = vmatpush1.msra.mxu0 0.0
  %628 = vmatprep.subr.mxu0 0.0
  %629 = vmatpush1.msra.mxu0 0.0
  %630 = vmatprep.mubr.f32.mxu0 0.0
  %631 = vmatmul.mubr.f32.gmra.mrb[0].mxu0 %v161
  %v632 = vpop.f32.mrb[0].mxu0
  %v633 = vadd.f32 0.0, %v632
  %v634 = vpop.f32.mrb[0].mxu0
  %635 = vmatprep.mubr.f32.mxu0 0.0
  %636 = vmatmul.mubr.f32.gmra.mrb[0].mxu0 %v164
  %v637 = vpop.f32.mrb[0].mxu0
  %v638 = vadd.f32 0.0, %v637
  %v639 = vpop.f32.mrb[0].mxu0
  %640 = vdwg.mxu0
  %vm641 = vcmask 130048
  %v643 = vsel %vm641, %v233, 0
  %v646 = vsel %vm641, %v238, 0
  %v649 = vsel %vm641, %v475, 0
  %v652 = vsel %vm641, %v480, 0
  %v655 = vsel %vm641, %v312, 0
  %v658 = vsel %vm641, %v317, 0
  %v661 = vsel %vm641, %v554, 0
  %v664 = vsel %vm641, %v559, 0
  %666 = vmatprep.subr.mxu0 0.0
  %667 = vmatpush1.xpose.msra.mxu0 %v655
  %668 = vmatprep.subr.mxu0 0.0
  %669 = vmatpush1.xpose.msra.mxu0 %v658
  %670 = vmatprep.subr.mxu0 0.0
  %671 = vmatpush1.xpose.msra.mxu0 %v661
  %672 = vmatprep.subr.mxu0 0.0
  %673 = vmatpush1.xpose.msra.mxu0 %v664
  %674 = vmatprep.subr.mxu0 0.0
  %675 = vmatpush1.xpose.msra.mxu0 0.0
  %676 = vmatprep.subr.mxu0 0.0
  %677 = vmatpush1.xpose.msra.mxu0 0.0
  %678 = vmatprep.subr.mxu0 0.0
  %679 = vmatpush1.xpose.msra.mxu0 0.0
  %680 = vmatprep.subr.mxu0 0.0
  %681 = vmatpush1.xpose.msra.mxu0 0.0
  %682 = vmatprep.subr.mxu0 0.0
  %683 = vmatpush1.xpose.msra.mxu0 0.0
  %684 = vmatprep.subr.mxu0 0.0
  %685 = vmatpush1.xpose.msra.mxu0 0.0
  %686 = vmatprep.subr.mxu0 0.0
  %687 = vmatpush1.xpose.msra.mxu0 0.0
  %688 = vmatprep.subr.mxu0 0.0
  %689 = vmatpush1.xpose.msra.mxu0 0.0
  %690 = vmatprep.subr.mxu0 0.0
  %691 = vmatpush1.xpose.msra.mxu0 0.0
  %692 = vmatprep.subr.mxu0 0.0
  %693 = vmatpush1.xpose.msra.mxu0 0.0
  %694 = vmatprep.subr.mxu0 0.0
  %695 = vmatpush1.xpose.msra.mxu0 0.0
  %696 = vmatprep.subr.mxu0 0.0
  %697 = vmatpush1.xpose.msra.mxu0 0.0
  %698 = vmatprep.subr.mxu0 0.0
  %699 = vmatpush1.xpose.msra.mxu0 0.0
  %700 = vmatprep.subr.mxu0 0.0
  %701 = vmatpush1.xpose.msra.mxu0 0.0
  %702 = vmatprep.subr.mxu0 0.0
  %703 = vmatpush1.xpose.msra.mxu0 0.0
  %704 = vmatprep.subr.mxu0 0.0
  %705 = vmatpush1.xpose.msra.mxu0 0.0
  %706 = vmatprep.subr.mxu0 0.0
  %707 = vmatpush1.xpose.msra.mxu0 0.0
  %708 = vmatprep.subr.mxu0 0.0
  %709 = vmatpush1.xpose.msra.mxu0 0.0
  %710 = vmatprep.subr.mxu0 0.0
  %711 = vmatpush1.xpose.msra.mxu0 0.0
  %712 = vmatprep.subr.mxu0 0.0
  %713 = vmatpush1.xpose.msra.mxu0 0.0
  %714 = vmatprep.subr.mxu0 0.0
  %715 = vmatpush1.xpose.msra.mxu0 0.0
  %716 = vmatprep.subr.mxu0 0.0
  %717 = vmatpush1.xpose.msra.mxu0 0.0
  %718 = vmatprep.subr.mxu0 0.0
  %719 = vmatpush1.xpose.msra.mxu0 0.0
  %720 = vmatprep.subr.mxu0 0.0
  %721 = vmatpush1.xpose.msra.mxu0 0.0
  %722 = vmatprep.subr.mxu0 0.0
  %723 = vmatpush1.xpose.msra.mxu0 0.0
  %724 = vmatprep.subr.mxu0 0.0
  %725 = vmatpush1.xpose.msra.mxu0 0.0
  %726 = vmatprep.subr.mxu0 0.0
  %727 = vmatpush1.xpose.msra.mxu0 0.0
  %728 = vmatprep.subr.mxu0 0.0
  %729 = vmatpush1.xpose.msra.mxu0 0.0
  %730 = vmatprep.mubr.f32.mxu0 0.0
  %731 = vmatmul.mubr.f32.gmra.mrb[0].mxu0 %v643
  %v732 = vpop.f32.mrb[0].mxu0
  %v733 = vadd.f32 %v146, %v732
  %v734 = vpop.f32.mrb[0].mxu0
  %735 = vmatprep.mubr.f32.mxu0 0.0
  %736 = vmatmul.mubr.f32.gmra.mrb[0].mxu0 %v646
  %v737 = vpop.f32.mrb[0].mxu0
  %v738 = vadd.f32 %v147, %v737
  %v739 = vpop.f32.mrb[0].mxu0
  %740 = vmatprep.mubr.f32.mxu0 0.0
  %741 = vmatmul.mubr.f32.gmra.mrb[0].mxu0 %v649
  %v742 = vpop.f32.mrb[0].mxu0
  %v743 = vadd.f32 %v148, %v742
  %v744 = vpop.f32.mrb[0].mxu0
  %745 = vmatprep.mubr.f32.mxu0 0.0
  %746 = vmatmul.mubr.f32.gmra.mrb[0].mxu0 %v652
  %v747 = vpop.f32.mrb[0].mxu0
  %v748 = vadd.f32 %v149, %v747
  %v749 = vpop.f32.mrb[0].mxu0
  %750 = vdwg.mxu0
  %v751 = vsel %vm159, %v733, -inf
  %752 = vmax.xlane.f32.xlu0 %v751
  %v753 = vpop.xlane.xlu0 %752
  %v754 = vsel %vm159, %v738, -inf
  %755 = vmax.xlane.f32.xlu0 %v754
  %v756 = vpop.xlane.xlu0 %755
  %v757 = vsel %vm159, %v743, -inf
  %758 = vmax.xlane.f32.xlu0 %v757
  %v759 = vpop.xlane.xlu0 %758
  %v760 = vsel %vm159, %v748, -inf
  %761 = vmax.xlane.f32.xlu0 %v760
  %v762 = vpop.xlane.xlu0 %761
  %v763 = vsub.f32 %v733, %v753
  %v764 = vsub.f32 %v738, %v756
  %v765 = vsub.f32 %v743, %v759
  %v766 = vsub.f32 %v748, %v762
  %v767 = vmul.f32 %v763, 1.442695
  %v768 = vpow.pop %v767
  %v769 = vmul.f32 %v764, 1.442695
  %v770 = vpow.pop %v769
  %v771 = vmul.f32 %v765, 1.442695
  %v772 = vpow.pop %v771
  %v773 = vmul.f32 %v766, 1.442695
  %v774 = vpow.pop %v773
  %v775 = vsel %vm159, %v768, 0.0
  %776 = vadd.xlane.f32.xlu0 %v775
  %v777 = vpop.xlane.xlu0 %776
  %v778 = vsel %vm159, %v770, 0.0
  %779 = vadd.xlane.f32.xlu0 %v778
  %v780 = vpop.xlane.xlu0 %779
  %v781 = vsel %vm159, %v772, 0.0
  %782 = vadd.xlane.f32.xlu0 %v781
  %v783 = vpop.xlane.xlu0 %782
  %v784 = vsel %vm159, %v774, 0.0
  %785 = vadd.xlane.f32.xlu0 %v784
  %v786 = vpop.xlane.xlu0 %785
  %v787 = vrcp.pop %v777
  %v788 = vmul.f32 %v768, %v787
  %v789 = vrcp.pop %v780
  %v790 = vmul.f32 %v770, %v789
  %v791 = vrcp.pop %v783
  %v792 = vmul.f32 %v772, %v791
  %v793 = vrcp.pop %v786
  %v794 = vmul.f32 %v774, %v793
  %v796 = vsel %vm159, %v788, 0
  %v799 = vsel %vm159, %v790, 0
  %v802 = vsel %vm159, %v792, 0
  %v805 = vsel %vm159, %v794, 0
  %807 = vmatprep.subr.mxu0 0.0
  %808 = vmatpush1.msra.mxu0 %v391
  %809 = vmatprep.subr.mxu0 0.0
  %810 = vmatpush1.msra.mxu0 %v396
  %811 = vmatprep.subr.mxu0 0.0
  %812 = vmatpush1.msra.mxu0 %v633
  %813 = vmatprep.subr.mxu0 0.0
  %814 = vmatpush1.msra.mxu0 %v638
  %815 = vmatprep.subr.mxu0 0.0
  %816 = vmatpush1.msra.mxu0 0.0
  %817 = vmatprep.subr.mxu0 0.0
  %818 = vmatpush1.msra.mxu0 0.0
  %819 = vmatprep.subr.mxu0 0.0
  %820 = vmatpush1.msra.mxu0 0.0
  %821 = vmatprep.subr.mxu0 0.0
  %822 = vmatpush1.msra.mxu0 0.0
  %823 = vmatprep.subr.mxu0 0.0
  %824 = vmatpush1.msra.mxu0 0.0
  %825 = vmatprep.subr.mxu0 0.0
  %826 = vmatpush1.msra.mxu0 0.0
  %827 = vmatprep.subr.mxu0 0.0
  %828 = vmatpush1.msra.mxu0 0.0
  %829 = vmatprep.subr.mxu0 0.0
  %830 = vmatpush1.msra.mxu0 0.0
  %831 = vmatprep.subr.mxu0 0.0
  %832 = vmatpush1.msra.mxu0 0.0
  %833 = vmatprep.subr.mxu0 0.0
  %834 = vmatpush1.msra.mxu0 0.0
  %835 = vmatprep.subr.mxu0 0.0
  %836 = vmatpush1.msra.mxu0 0.0
  %837 = vmatprep.subr.mxu0 0.0
  %838 = vmatpush1.msra.mxu0 0.0
  %839 = vmatprep.subr.mxu0 0.0
  %840 = vmatpush1.msra.mxu0 0.0
  %841 = vmatprep.subr.mxu0 0.0
  %842 = vmatpush1.msra.mxu0 0.0
  %843 = vmatprep.subr.mxu0 0.0
  %844 = vmatpush1.msra.mxu0 0.0
  %845 = vmatprep.subr.mxu0 0.0
  %846 = vmatpush1.msra.mxu0 0.0
  %847 = vmatprep.subr.mxu0 0.0
  %848 = vmatpush1.msra.mxu0 0.0
  %849 = vmatprep.subr.mxu0 0.0
  %850 = vmatpush1.msra.mxu0 0.0
  %851 = vmatprep.subr.mxu0 0.0
  %852 = vmatpush1.msra.mxu0 0.0
  %853 = vmatprep.subr.mxu0 0.0
  %854 = vmatpush1.msra.mxu0 0.0
  %855 = vmatprep.subr.mxu0 0.0
  %856 = vmatpush1.msra.mxu0 0.0
  %857 = vmatprep.subr.mxu0 0.0
  %858 = vmatpush1.msra.mxu0 0.0
  %859 = vmatprep.subr.mxu0 0.0
  %860 = vmatpush1.msra.mxu0 0.0
  %861 = vmatprep.subr.mxu0 0.0
  %862 = vmatpush1.msra.mxu0 0.0
  %863 = vmatprep.subr.mxu0 0.0
  %864 = vmatpush1.msra.mxu0 0.0
  %865 = vmatprep.subr.mxu0 0.0
  %866 = vmatpush1.msra.mxu0 0.0
  %867 = vmatprep.subr.mxu0 0.0
  %868 = vmatpush1.msra.mxu0 0.0
  %869 = vmatprep.subr.mxu0 0.0
  %870 = vmatpush1.msra.mxu0 0.0
  %871 = vmatprep.mubr.f32.mxu0 0.0
  %872 = vmatmul.mubr.f32.gmra.mrb[0].mxu0 %v796
  %v873 = vpop.f32.mrb[0].mxu0
  %v874 = vadd.f32 0.0, %v873
  %v875 = vpop.f32.mrb[0].mxu0
  %876 = vmatprep.mubr.f32.mxu0 0.0
  %877 = vmatmul.mubr.f32.gmra.mrb[0].mxu0 %v799
  %v878 = vpop.f32.mrb[0].mxu0
  %v879 = vadd.f32 0.0, %v878
  %v880 = vpop.f32.mrb[0].mxu0
  %881 = vmatprep.mubr.f32.mxu0 0.0
  %882 = vmatmul.mubr.f32.gmra.mrb[0].mxu0 %v802
  %v883 = vpop.f32.mrb[0].mxu0
  %v884 = vadd.f32 0.0, %v883
  %v885 = vpop.f32.mrb[0].mxu0
  %886 = vmatprep.mubr.f32.mxu0 0.0
  %887 = vmatmul.mubr.f32.gmra.mrb[0].mxu0 %v805
  %v888 = vpop.f32.mrb[0].mxu0
  %v889 = vadd.f32 0.0, %v888
  %v890 = vpop.f32.mrb[0].mxu0
  %891 = vdwg.mxu0
  %v892 = vld [vmem:[%s1 + $0x118] sm:$0x1]
  %v893 = vld [vmem:[%s1 + $0xf8] sm:$0xff]
  %v894 = vld [vmem:[%s1 + $0x100] sm:$0xff]
  %v896 = vsel %vm641, %v874, 0
  %v899 = vsel %vm641, %v879, 0
  %901 = vmatprep.subr.mxu0 0.0
  %902 = vmatpush1.msra.mxu0 %v893
  %903 = vmatprep.subr.mxu0 0.0
  %904 = vmatpush1.msra.mxu0 %v894
  %905 = vmatprep.subr.mxu0 0.0
  %906 = vmatpush1.msra.mxu0 0.0
  %907 = vmatprep.subr.mxu0 0.0
  %908 = vmatpush1.msra.mxu0 0.0
  %909 = vmatprep.subr.mxu0 0.0
  %910 = vmatpush1.msra.mxu0 0.0
  %911 = vmatprep.subr.mxu0 0.0
  %912 = vmatpush1.msra.mxu0 0.0
  %913 = vmatprep.subr.mxu0 0.0
  %914 = vmatpush1.msra.mxu0 0.0
  %915 = vmatprep.subr.mxu0 0.0
  %916 = vmatpush1.msra.mxu0 0.0
  %917 = vmatprep.subr.mxu0 0.0
  %918 = vmatpush1.msra.mxu0 0.0
  %919 = vmatprep.subr.mxu0 0.0
  %920 = vmatpush1.msra.mxu0 0.0
  %921 = vmatprep.subr.mxu0 0.0
  %922 = vmatpush1.msra.mxu0 0.0
  %923 = vmatprep.subr.mxu0 0.0
  %924 = vmatpush1.msra.mxu0 0.0
  %925 = vmatprep.subr.mxu0 0.0
  %926 = vmatpush1.msra.mxu0 0.0
  %927 = vmatprep.subr.mxu0 0.0
  %928 = vmatpush1.msra.mxu0 0.0
  %929 = vmatprep.subr.mxu0 0.0
  %930 = vmatpush1.msra.mxu0 0.0
  %931 = vmatprep.subr.mxu0 0.0
  %932 = vmatpush1.msra.mxu0 0.0
  %933 = vmatprep.subr.mxu0 0.0
  %934 = vmatpush1.msra.mxu0 0.0
  %935 = vmatprep.subr.mxu0 0.0
  %936 = vmatpush1.msra.mxu0 0.0
  %937 = vmatprep.subr.mxu0 0.0
  %938 = vmatpush1.msra.mxu0 0.0
  %939 = vmatprep.subr.mxu0 0.0
  %940 = vmatpush1.msra.mxu0 0.0
  %941 = vmatprep.subr.mxu0 0.0
  %942 = vmatpush1.msra.mxu0 0.0
  %943 = vmatprep.subr.mxu0 0.0
  %944 = vmatpush1.msra.mxu0 0.0
  %945 = vmatprep.subr.mxu0 0.0
  %946 = vmatpush1.msra.mxu0 0.0
  %947 = vmatprep.subr.mxu0 0.0
  %948 = vmatpush1.msra.mxu0 0.0
  %949 = vmatprep.subr.mxu0 0.0
  %950 = vmatpush1.msra.mxu0 0.0
  %951 = vmatprep.subr.mxu0 0.0
  %952 = vmatpush1.msra.mxu0 0.0
  %953 = vmatprep.subr.mxu0 0.0
  %954 = vmatpush1.msra.mxu0 0.0
  %955 = vmatprep.subr.mxu0 0.0
  %956 = vmatpush1.msra.mxu0 0.0
  %957 = vmatprep.subr.mxu0 0.0
  %958 = vmatpush1.msra.mxu0 0.0
  %959 = vmatprep.subr.mxu0 0.0
  %960 = vmatpush1.msra.mxu0 0.0
  %961 = vmatprep.subr.mxu0 0.0
  %962 = vmatpush1.msra.mxu0 0.0
  %963 = vmatprep.subr.mxu0 0.0
  %964 = vmatpush1.msra.mxu0 0.0
  %965 = vmatprep.mubr.f32.mxu0 0.0
  %966 = vmatmul.mubr.f32.gmra.mrb[0].mxu0 %v896
  %v967 = vpop.f32.mrb[0].mxu0
  %v968 = vadd.f32 0.0, %v967
  %v969 = vpop.f32.mrb[0].mxu0
  %970 = vmatprep.mubr.f32.mxu0 0.0
  %971 = vmatmul.mubr.f32.gmra.mrb[0].mxu0 %v899
  %v972 = vpop.f32.mrb[0].mxu0
  %v973 = vadd.f32 0.0, %v972
  %v974 = vpop.f32.mrb[0].mxu0
  %975 = vdwg.mxu0
  %v976 = vlaneseq
  %v977 = vshrl.u32 %v976, 7
  %v978 = vsub.s32 0, %v977
  %v979 = vrot.slane %v892, %v978
  %v980 = vadd.f32 %v979, %v968
  %v981 = vadd.f32 %v979, %v973
  %v982 = vld [vmem:[%s1 + $0x108] sm:$0xff]
  %v983 = vld [vmem:[%s1 + $0x110] sm:$0xff]
  %v985 = vsel %vm641, %v884, 0
  %v988 = vsel %vm641, %v889, 0
  %990 = vmatprep.subr.mxu0 0.0
  %991 = vmatpush1.msra.mxu0 %v982
  %992 = vmatprep.subr.mxu0 0.0
  %993 = vmatpush1.msra.mxu0 %v983
  %994 = vmatprep.subr.mxu0 0.0
  %995 = vmatpush1.msra.mxu0 0.0
  %996 = vmatprep.subr.mxu0 0.0
  %997 = vmatpush1.msra.mxu0 0.0
  %998 = vmatprep.subr.mxu0 0.0
  %999 = vmatpush1.msra.mxu0 0.0
  %1000 = vmatprep.subr.mxu0 0.0
  %1001 = vmatpush1.msra.mxu0 0.0
  %1002 = vmatprep.subr.mxu0 0.0
  %1003 = vmatpush1.msra.mxu0 0.0
  %1004 = vmatprep.subr.mxu0 0.0
  %1005 = vmatpush1.msra.mxu0 0.0
  %1006 = vmatprep.subr.mxu0 0.0
  %1007 = vmatpush1.msra.mxu0 0.0
  %1008 = vmatprep.subr.mxu0 0.0
  %1009 = vmatpush1.msra.mxu0 0.0
  %1010 = vmatprep.subr.mxu0 0.0
  %1011 = vmatpush1.msra.mxu0 0.0
  %1012 = vmatprep.subr.mxu0 0.0
  %1013 = vmatpush1.msra.mxu0 0.0
  %1014 = vmatprep.subr.mxu0 0.0
  %1015 = vmatpush1.msra.mxu0 0.0
  %1016 = vmatprep.subr.mxu0 0.0
  %1017 = vmatpush1.msra.mxu0 0.0
  %1018 = vmatprep.subr.mxu0 0.0
  %1019 = vmatpush1.msra.mxu0 0.0
  %1020 = vmatprep.subr.mxu0 0.0
  %1021 = vmatpush1.msra.mxu0 0.0
  %1022 = vmatprep.subr.mxu0 0.0
  %1023 = vmatpush1.msra.mxu0 0.0
  %1024 = vmatprep.subr.mxu0 0.0
  %1025 = vmatpush1.msra.mxu0 0.0
  %1026 = vmatprep.subr.mxu0 0.0
  %1027 = vmatpush1.msra.mxu0 0.0
  %1028 = vmatprep.subr.mxu0 0.0
  %1029 = vmatpush1.msra.mxu0 0.0
  %1030 = vmatprep.subr.mxu0 0.0
  %1031 = vmatpush1.msra.mxu0 0.0
  %1032 = vmatprep.subr.mxu0 0.0
  %1033 = vmatpush1.msra.mxu0 0.0
  %1034 = vmatprep.subr.mxu0 0.0
  %1035 = vmatpush1.msra.mxu0 0.0
  %1036 = vmatprep.subr.mxu0 0.0
  %1037 = vmatpush1.msra.mxu0 0.0
  %1038 = vmatprep.subr.mxu0 0.0
  %1039 = vmatpush1.msra.mxu0 0.0
  %1040 = vmatprep.subr.mxu0 0.0
  %1041 = vmatpush1.msra.mxu0 0.0
  %1042 = vmatprep.subr.mxu0 0.0
  %1043 = vmatpush1.msra.mxu0 0.0
  %1044 = vmatprep.subr.mxu0 0.0
  %1045 = vmatpush1.msra.mxu0 0.0
  %1046 = vmatprep.subr.mxu0 0.0
  %1047 = vmatpush1.msra.mxu0 0.0
  %1048 = vmatprep.subr.mxu0 0.0
  %1049 = vmatpush1.msra.mxu0 0.0
  %1050 = vmatprep.subr.mxu0 0.0
  %1051 = vmatpush1.msra.mxu0 0.0
  %1052 = vmatprep.subr.mxu0 0.0
  %1053 = vmatpush1.msra.mxu0 0.0
  %1054 = vmatprep.mubr.f32.mxu0 0.0
  %1055 = vmatmul.mubr.f32.gmra.mrb[0].mxu0 %v985
  %v1056 = vpop.f32.mrb[0].mxu0
  %v1057 = vadd.f32 0.0, %v1056
  %v1058 = vpop.f32.mrb[0].mxu0
  %1059 = vmatprep.mubr.f32.mxu0 0.0
  %1060 = vmatmul.mubr.f32.gmra.mrb[0].mxu0 %v988
  %v1061 = vpop.f32.mrb[0].mxu0
  %v1062 = vadd.f32 0.0, %v1061
  %v1063 = vpop.f32.mrb[0].mxu0
  %1064 = vdwg.mxu0
  %v1065 = vadd.f32 %v980, %v1057
  %v1066 = vadd.f32 %v981, %v1062
  %v1067 = vadd.f32 %v99, %v1065
  %v1068 = vadd.f32 %v104, %v1066
  %v1069 = vld [vmem:[%s1 + $0x170] sm:$0x1]
  %v1070 = vld [vmem:[%s1 + $0x178] sm:$0x1]
  %v1071 = vsel %vm159, %v1067, 0.0
  %1072 = vadd.xlane.f32.xlu0 %v1071
  %v1073 = vpop.xlane.xlu0 %1072
  %v1074 = vsel %vm159, %v1068, 0.0
  %1075 = vadd.xlane.f32.xlu0 %v1074
  %v1076 = vpop.xlane.xlu0 %1075
  %v1077 = vrcp.pop 32.0
  %v1078 = vmul.f32 %v1073, %v1077
  %v1079 = vmul.f32 %v1076, %v1077
  %v1080 = vsub.f32 %v1067, %v1078
  %v1081 = vsub.f32 %v1068, %v1079
  %v1082 = vmul.f32 %v1080, %v1080
  %v1083 = vmul.f32 %v1081, %v1081
  %v1084 = vsel %vm159, %v1082, 0.0
  %1085 = vadd.xlane.f32.xlu0 %v1084
  %v1086 = vpop.xlane.xlu0 %1085
  %v1087 = vsel %vm159, %v1083, 0.0
  %1088 = vadd.xlane.f32.xlu0 %v1087
  %v1089 = vpop.xlane.xlu0 %1088
  %v1090 = vmul.f32 %v1086, %v1077
  %v1091 = vmul.f32 %v1089, %v1077
  %v1092 = vadd.f32 %v1090, 1e-05
  %v1093 = vadd.f32 %v1091, 1e-05
  %v1094 = vrsqrt.pop %v1092
  %v1095 = vrsqrt.pop %v1093
  %v1096 = vmul.f32 %v1080, %v1094
  %v1097 = vmul.f32 %v1081, %v1095
  %v1098 = vlaneseq
  %v1099 = vshrl.u32 %v1098, 7
  %v1100 = vsub.s32 0, %v1099
  %v1101 = vrot.slane %v1069, %v1100
  %v1102 = vmul.f32 %v1096, %v1101
  %v1103 = vmul.f32 %v1097, %v1101
  %v1104 = vlaneseq
  %v1105 = vshrl.u32 %v1104, 7
  %v1106 = vsub.s32 0, %v1105
  %v1107 = vrot.slane %v1070, %v1106
  %v1108 = vadd.f32 %v1102, %v1107
  %v1109 = vadd.f32 %v1103, %v1107
  %v1110 = vld [vmem:[%s1 + $0x120] sm:$0xff]
  %v1111 = vld [vmem:[%s1 + $0x128] sm:$0xff]
  %v1112 = vld [vmem:[%s1 + $0x130] sm:$0xff]
  %v1113 = vld [vmem:[%s1 + $0x138] sm:$0xff]
  %v1114 = vld [vmem:[%s1 + $0x140] sm:$0x1]
  %v1115 = vlaneseq
  %v1116 = vshrl.u32 %v1115, 7
  %v1117 = vsub.s32 0, %v1116
  %v1118 = vrot.slane %v1114, %v1117
  %v1120 = vsel %vm159, %v1108, 0
  %v1123 = vsel %vm159, %v1109, 0
  %1125 = vmatprep.subr.mxu0 0.0
  %1126 = vmatpush1.msra.mxu0 %v1110
  %1127 = vmatprep.subr.mxu0 0.0
  %1128 = vmatpush1.msra.mxu0 %v1111
  %1129 = vmatprep.subr.mxu0 0.0
  %1130 = vmatpush1.msra.mxu0 %v1112
  %1131 = vmatprep.subr.mxu0 0.0
  %1132 = vmatpush1.msra.mxu0 %v1113
  %1133 = vmatprep.subr.mxu0 0.0
  %1134 = vmatpush1.msra.mxu0 0.0
  %1135 = vmatprep.subr.mxu0 0.0
  %1136 = vmatpush1.msra.mxu0 0.0
  %1137 = vmatprep.subr.mxu0 0.0
  %1138 = vmatpush1.msra.mxu0 0.0
  %1139 = vmatprep.subr.mxu0 0.0
  %1140 = vmatpush1.msra.mxu0 0.0
  %1141 = vmatprep.subr.mxu0 0.0
  %1142 = vmatpush1.msra.mxu0 0.0
  %1143 = vmatprep.subr.mxu0 0.0
  %1144 = vmatpush1.msra.mxu0 0.0
  %1145 = vmatprep.subr.mxu0 0.0
  %1146 = vmatpush1.msra.mxu0 0.0
  %1147 = vmatprep.subr.mxu0 0.0
  %1148 = vmatpush1.msra.mxu0 0.0
  %1149 = vmatprep.subr.mxu0 0.0
  %1150 = vmatpush1.msra.mxu0 0.0
  %1151 = vmatprep.subr.mxu0 0.0
  %1152 = vmatpush1.msra.mxu0 0.0
  %1153 = vmatprep.subr.mxu0 0.0
  %1154 = vmatpush1.msra.mxu0 0.0
  %1155 = vmatprep.subr.mxu0 0.0
  %1156 = vmatpush1.msra.mxu0 0.0
  %1157 = vmatprep.subr.mxu0 0.0
  %1158 = vmatpush1.msra.mxu0 0.0
  %1159 = vmatprep.subr.mxu0 0.0
  %1160 = vmatpush1.msra.mxu0 0.0
  %1161 = vmatprep.subr.mxu0 0.0
  %1162 = vmatpush1.msra.mxu0 0.0
  %1163 = vmatprep.subr.mxu0 0.0
  %1164 = vmatpush1.msra.mxu0 0.0
  %1165 = vmatprep.subr.mxu0 0.0
  %1166 = vmatpush1.msra.mxu0 0.0
  %1167 = vmatprep.subr.mxu0 0.0
  %1168 = vmatpush1.msra.mxu0 0.0
  %1169 = vmatprep.subr.mxu0 0.0
  %1170 = vmatpush1.msra.mxu0 0.0
  %1171 = vmatprep.subr.mxu0 0.0
  %1172 = vmatpush1.msra.mxu0 0.0
  %1173 = vmatprep.subr.mxu0 0.0
  %1174 = vmatpush1.msra.mxu0 0.0
  %1175 = vmatprep.subr.mxu0 0.0
  %1176 = vmatpush1.msra.mxu0 0.0
  %1177 = vmatprep.subr.mxu0 0.0
  %1178 = vmatpush1.msra.mxu0 0.0
  %1179 = vmatprep.subr.mxu0 0.0
  %1180 = vmatpush1.msra.mxu0 0.0
  %1181 = vmatprep.subr.mxu0 0.0
  %1182 = vmatpush1.msra.mxu0 0.0
  %1183 = vmatprep.subr.mxu0 0.0
  %1184 = vmatpush1.msra.mxu0 0.0
  %1185 = vmatprep.subr.mxu0 0.0
  %1186 = vmatpush1.msra.mxu0 0.0
  %1187 = vmatprep.subr.mxu0 0.0
  %1188 = vmatpush1.msra.mxu0 0.0
  %1189 = vmatprep.mubr.f32.mxu0 0.0
  %1190 = vmatmul.mubr.f32.gmra.mrb[0].mxu0 %v1120
  %v1191 = vpop.f32.mrb[0].mxu0
  %v1192 = vadd.f32 %v1118, %v1191
  %v1193 = vpop.f32.mrb[0].mxu0
  %1194 = vmatprep.mubr.f32.mxu0 0.0
  %1195 = vmatmul.mubr.f32.gmra.mrb[0].mxu0 %v1123
  %v1196 = vpop.f32.mrb[0].mxu0
  %v1197 = vadd.f32 %v1118, %v1196
  %v1198 = vpop.f32.mrb[0].mxu0
  %1199 = vdwg.mxu0
  %v1200 = vmax.f32 %v1192, 0.0
  %v1201 = vmax.f32 %v1197, 0.0
  %v1202 = vld [vmem:[%s1 + $0x148] sm:$0xff]
  %v1203 = vld [vmem:[%s1 + $0x150] sm:$0xff]
  %v1204 = vld [vmem:[%s1 + $0x158] sm:$0xff]
  %v1205 = vld [vmem:[%s1 + $0x160] sm:$0xff]
  %v1206 = vld [vmem:[%s1 + $0x168] sm:$0x1]
  %v1207 = vlaneseq
  %v1208 = vshrl.u32 %v1207, 7
  %v1209 = vsub.s32 0, %v1208
  %v1210 = vrot.slane %v1206, %v1209
  %v1212 = vsel %vm159, %v1200, 0
  %v1215 = vsel %vm159, %v1201, 0
  %1217 = vmatprep.subr.mxu0 0.0
  %1218 = vmatpush1.msra.mxu0 %v1202
  %1219 = vmatprep.subr.mxu0 0.0
  %1220 = vmatpush1.msra.mxu0 %v1203
  %1221 = vmatprep.subr.mxu0 0.0
  %1222 = vmatpush1.msra.mxu0 %v1204
  %1223 = vmatprep.subr.mxu0 0.0
  %1224 = vmatpush1.msra.mxu0 %v1205
  %1225 = vmatprep.subr.mxu0 0.0
  %1226 = vmatpush1.msra.mxu0 0.0
  %1227 = vmatprep.subr.mxu0 0.0
  %1228 = vmatpush1.msra.mxu0 0.0
  %1229 = vmatprep.subr.mxu0 0.0
  %1230 = vmatpush1.msra.mxu0 0.0
  %1231 = vmatprep.subr.mxu0 0.0
  %1232 = vmatpush1.msra.mxu0 0.0
  %1233 = vmatprep.subr.mxu0 0.0
  %1234 = vmatpush1.msra.mxu0 0.0
  %1235 = vmatprep.subr.mxu0 0.0
  %1236 = vmatpush1.msra.mxu0 0.0
  %1237 = vmatprep.subr.mxu0 0.0
  %1238 = vmatpush1.msra.mxu0 0.0
  %1239 = vmatprep.subr.mxu0 0.0
  %1240 = vmatpush1.msra.mxu0 0.0
  %1241 = vmatprep.subr.mxu0 0.0
  %1242 = vmatpush1.msra.mxu0 0.0
  %1243 = vmatprep.subr.mxu0 0.0
  %1244 = vmatpush1.msra.mxu0 0.0
  %1245 = vmatprep.subr.mxu0 0.0
  %1246 = vmatpush1.msra.mxu0 0.0
  %1247 = vmatprep.subr.mxu0 0.0
  %1248 = vmatpush1.msra.mxu0 0.0
  %1249 = vmatprep.subr.mxu0 0.0
  %1250 = vmatpush1.msra.mxu0 0.0
  %1251 = vmatprep.subr.mxu0 0.0
  %1252 = vmatpush1.msra.mxu0 0.0
  %1253 = vmatprep.subr.mxu0 0.0
  %1254 = vmatpush1.msra.mxu0 0.0
  %1255 = vmatprep.subr.mxu0 0.0
  %1256 = vmatpush1.msra.mxu0 0.0
  %1257 = vmatprep.subr.mxu0 0.0
  %1258 = vmatpush1.msra.mxu0 0.0
  %1259 = vmatprep.subr.mxu0 0.0
  %1260 = vmatpush1.msra.mxu0 0.0
  %1261 = vmatprep.subr.mxu0 0.0
  %1262 = vmatpush1.msra.mxu0 0.0
  %1263 = vmatprep.subr.mxu0 0.0
  %1264 = vmatpush1.msra.mxu0 0.0
  %1265 = vmatprep.subr.mxu0 0.0
  %1266 = vmatpush1.msra.mxu0 0.0
  %1267 = vmatprep.subr.mxu0 0.0
  %1268 = vmatpush1.msra.mxu0 0.0
  %1269 = vmatprep.subr.mxu0 0.0
  %1270 = vmatpush1.msra.mxu0 0.0
  %1271 = vmatprep.subr.mxu0 0.0
  %1272 = vmatpush1.msra.mxu0 0.0
  %1273 = vmatprep.subr.mxu0 0.0
  %1274 = vmatpush1.msra.mxu0 0.0
  %1275 = vmatprep.subr.mxu0 0.0
  %1276 = vmatpush1.msra.mxu0 0.0
  %1277 = vmatprep.subr.mxu0 0.0
  %1278 = vmatpush1.msra.mxu0 0.0
  %1279 = vmatprep.subr.mxu0 0.0
  %1280 = vmatpush1.msra.mxu0 0.0
  %1281 = vmatprep.mubr.f32.mxu0 0.0
  %1282 = vmatmul.mubr.f32.gmra.mrb[0].mxu0 %v1212
  %v1283 = vpop.f32.mrb[0].mxu0
  %v1284 = vadd.f32 %v1210, %v1283
  %v1285 = vpop.f32.mrb[0].mxu0
  %1286 = vmatprep.mubr.f32.mxu0 0.0
  %1287 = vmatmul.mubr.f32.gmra.mrb[0].mxu0 %v1215
  %v1288 = vpop.f32.mrb[0].mxu0
  %v1289 = vadd.f32 %v1210, %v1288
  %v1290 = vpop.f32.mrb[0].mxu0
  %1291 = vdwg.mxu0
  %v1292 = vadd.f32 %v1108, %v1284
  %v1293 = vadd.f32 %v1109, %v1289
  %v1294 = vld [vmem:[%s1 + $0x180] sm:$0x1]
  %v1295 = vld [vmem:[%s1 + $0x188] sm:$0x1]
  %v1296 = vsel %vm159, %v1292, 0.0
  %1297 = vadd.xlane.f32.xlu0 %v1296
  %v1298 = vpop.xlane.xlu0 %1297
  %v1299 = vsel %vm159, %v1293, 0.0
  %1300 = vadd.xlane.f32.xlu0 %v1299
  %v1301 = vpop.xlane.xlu0 %1300
  %v1302 = vmul.f32 %v1298, %v1077
  %v1303 = vmul.f32 %v1301, %v1077
  %v1304 = vsub.f32 %v1292, %v1302
  %v1305 = vsub.f32 %v1293, %v1303
  %v1306 = vmul.f32 %v1304, %v1304
  %v1307 = vmul.f32 %v1305, %v1305
  %v1308 = vsel %vm159, %v1306, 0.0
  %1309 = vadd.xlane.f32.xlu0 %v1308
  %v1310 = vpop.xlane.xlu0 %1309
  %v1311 = vsel %vm159, %v1307, 0.0
  %1312 = vadd.xlane.f32.xlu0 %v1311
  %v1313 = vpop.xlane.xlu0 %1312
  %v1314 = vmul.f32 %v1310, %v1077
  %v1315 = vmul.f32 %v1313, %v1077
  %v1316 = vadd.f32 %v1314, 1e-05
  %v1317 = vadd.f32 %v1315, 1e-05
  %v1318 = vrsqrt.pop %v1316
  %v1319 = vrsqrt.pop %v1317
  %v1320 = vmul.f32 %v1304, %v1318
  %v1321 = vmul.f32 %v1305, %v1319
  %v1322 = vlaneseq
  %v1323 = vshrl.u32 %v1322, 7
  %v1324 = vsub.s32 0, %v1323
  %v1325 = vrot.slane %v1294, %v1324
  %v1326 = vmul.f32 %v1320, %v1325
  %v1327 = vmul.f32 %v1321, %v1325
  %v1328 = vlaneseq
  %v1329 = vshrl.u32 %v1328, 7
  %v1330 = vsub.s32 0, %v1329
  %v1331 = vrot.slane %v1295, %v1330
  %v1332 = vadd.f32 %v1326, %v1331
  %v1333 = vadd.f32 %v1327, %v1331
  %v1334 = vmul.u32 %v108, 8
  %v1335 = vadd.s32 %v1334, 7
  %vm1336 = vcmp.eq.s32.totalorder %v113, %v1335
  %v1337 = vsel %vm1336, 1, 0
  %v1338 = vcvt.s32.f32 %v1337
  %v1340 = vsel %vm641, %v1338, 0
  %1342 = vmatprep.subr.mxu0 0.0
  %1343 = vmatpush1.msra.mxu0 %v1332
  %1344 = vmatprep.subr.mxu0 0.0
  %1345 = vmatpush1.msra.mxu0 %v1333
  %1346 = vmatprep.subr.mxu0 0.0
  %1347 = vmatpush1.msra.mxu0 0.0
  %1348 = vmatprep.subr.mxu0 0.0
  %1349 = vmatpush1.msra.mxu0 0.0
  %1350 = vmatprep.subr.mxu0 0.0
  %1351 = vmatpush1.msra.mxu0 0.0
  %1352 = vmatprep.subr.mxu0 0.0
  %1353 = vmatpush1.msra.mxu0 0.0
  %1354 = vmatprep.subr.mxu0 0.0
  %1355 = vmatpush1.msra.mxu0 0.0
  %1356 = vmatprep.subr.mxu0 0.0
  %1357 = vmatpush1.msra.mxu0 0.0
  %1358 = vmatprep.subr.mxu0 0.0
  %1359 = vmatpush1.msra.mxu0 0.0
  %1360 = vmatprep.subr.mxu0 0.0
  %1361 = vmatpush1.msra.mxu0 0.0
  %1362 = vmatprep.subr.mxu0 0.0
  %1363 = vmatpush1.msra.mxu0 0.0
  %1364 = vmatprep.subr.mxu0 0.0
  %1365 = vmatpush1.msra.mxu0 0.0
  %1366 = vmatprep.subr.mxu0 0.0
  %1367 = vmatpush1.msra.mxu0 0.0
  %1368 = vmatprep.subr.mxu0 0.0
  %1369 = vmatpush1.msra.mxu0 0.0
  %1370 = vmatprep.subr.mxu0 0.0
  %1371 = vmatpush1.msra.mxu0 0.0
  %1372 = vmatprep.subr.mxu0 0.0
  %1373 = vmatpush1.msra.mxu0 0.0
  %1374 = vmatprep.subr.mxu0 0.0
  %1375 = vmatpush1.msra.mxu0 0.0
  %1376 = vmatprep.subr.mxu0 0.0
  %1377 = vmatpush1.msra.mxu0 0.0
  %1378 = vmatprep.subr.mxu0 0.0
  %1379 = vmatpush1.msra.mxu0 0.0
  %1380 = vmatprep.subr.mxu0 0.0
  %1381 = vmatpush1.msra.mxu0 0.0
  %1382 = vmatprep.subr.mxu0 0.0
  %1383 = vmatpush1.msra.mxu0 0.0
  %1384 = vmatprep.subr.mxu0 0.0
  %1385 = vmatpush1.msra.mxu0 0.0
  %1386 = vmatprep.subr.mxu0 0.0
  %1387 = vmatpush1.msra.mxu0 0.0
  %1388 = vmatprep.subr.mxu0 0.0
  %1389 = vmatpush1.msra.mxu0 0.0
  %1390 = vmatprep.subr.mxu0 0.0
  %1391 = vmatpush1.msra.mxu0 0.0
  %1392 = vmatprep.subr.mxu0 0.0
  %1393 = vmatpush1.msra.mxu0 0.0
  %1394 = vmatprep.subr.mxu0 0.0
  %1395 = vmatpush1.msra.mxu0 0.0
  %1396 = vmatprep.subr.mxu0 0.0
  %1397 = vmatpush1.msra.mxu0 0.0
  %1398 = vmatprep.subr.mxu0 0.0
  %1399 = vmatpush1.msra.mxu0 0.0
  %1400 = vmatprep.subr.mxu0 0.0
  %1401 = vmatpush1.msra.mxu0 0.0
  %1402 = vmatprep.subr.mxu0 0.0
  %1403 = vmatpush1.msra.mxu0 0.0
  %1404 = vmatprep.subr.mxu0 0.0
  %1405 = vmatpush1.msra.mxu0 0.0
  %1406 = vmatprep.mubr.f32.mxu0 0.0
  %1407 = vmatmul.mubr.f32.gmra.mrb[0].mxu0 %v1340
  %v1408 = vpop.f32.mrb[0].mxu0
  %v1409 = vadd.f32 0.0, %v1408
  %v1410 = vpop.f32.mrb[0].mxu0
  %1411 = vdwg.mxu0
  %v1412 = vld [vmem:[%s1 + $0x190] sm:$0xff]
  %v1413 = vld [vmem:[%s1 + $0x198] sm:$0xff]
  %v1414 = vld [vmem:[%s1 + $0x1a0] sm:$0xff]
  %v1415 = vld [vmem:[%s1 + $0x1a8] sm:$0xff]
  %v1416 = vld [vmem:[%s1 + $0x1b0] sm:$0x1]
  %v1417 = vlaneseq
  %v1418 = vshrl.u32 %v1417, 7
  %v1419 = vsub.s32 0, %v1418
  %v1420 = vrot.slane %v1416, %v1419
  %v1422 = vsel %vm159, %v1409, 0
  %1424 = vmatprep.subr.mxu0 0.0
  %1425 = vmatpush1.msra.mxu0 %v1412
  %1426 = vmatprep.subr.mxu0 0.0
  %1427 = vmatpush1.msra.mxu0 %v1413
  %1428 = vmatprep.subr.mxu0 0.0
  %1429 = vmatpush1.msra.mxu0 %v1414
  %1430 = vmatprep.subr.mxu0 0.0
  %1431 = vmatpush1.msra.mxu0 %v1415
  %1432 = vmatprep.subr.mxu0 0.0
  %1433 = vmatpush1.msra.mxu0 0.0
  %1434 = vmatprep.subr.mxu0 0.0
  %1435 = vmatpush1.msra.mxu0 0.0
  %1436 = vmatprep.subr.mxu0 0.0
  %1437 = vmatpush1.msra.mxu0 0.0
  %1438 = vmatprep.subr.mxu0 0.0
  %1439 = vmatpush1.msra.mxu0 0.0
  %1440 = vmatprep.subr.mxu0 0.0
  %1441 = vmatpush1.msra.mxu0 0.0
  %1442 = vmatprep.subr.mxu0 0.0
  %1443 = vmatpush1.msra.mxu0 0.0
  %1444 = vmatprep.subr.mxu0 0.0
  %1445 = vmatpush1.msra.mxu0 0.0
  %1446 = vmatprep.subr.mxu0 0.0
  %1447 = vmatpush1.msra.mxu0 0.0
  %1448 = vmatprep.subr.mxu0 0.0
  %1449 = vmatpush1.msra.mxu0 0.0
  %1450 = vmatprep.subr.mxu0 0.0
  %1451 = vmatpush1.msra.mxu0 0.0
  %1452 = vmatprep.subr.mxu0 0.0
  %1453 = vmatpush1.msra.mxu0 0.0
  %1454 = vmatprep.subr.mxu0 0.0
  %1455 = vmatpush1.msra.mxu0 0.0
  %1456 = vmatprep.subr.mxu0 0.0
  %1457 = vmatpush1.msra.mxu0 0.0
  %1458 = vmatprep.subr.mxu0 0.0
  %1459 = vmatpush1.msra.mxu0 0.0
  %1460 = vmatprep.subr.mxu0 0.0
  %1461 = vmatpush1.msra.mxu0 0.0
  %1462 = vmatprep.subr.mxu0 0.0
  %1463 = vmatpush1.msra.mxu0 0.0
  %1464 = vmatprep.subr.mxu0 0.0
  %1465 = vmatpush1.msra.mxu0 0.0
  %1466 = vmatprep.subr.mxu0 0.0
  %1467 = vmatpush1.msra.mxu0 0.0
  %1468 = vmatprep.subr.mxu0 0.0
  %1469 = vmatpush1.msra.mxu0 0.0
  %1470 = vmatprep.subr.mxu0 0.0
  %1471 = vmatpush1.msra.mxu0 0.0
  %1472 = vmatprep.subr.mxu0 0.0
  %1473 = vmatpush1.msra.mxu0 0.0
  %1474 = vmatprep.subr.mxu0 0.0
  %1475 = vmatpush1.msra.mxu0 0.0
  %1476 = vmatprep.subr.mxu0 0.0
  %1477 = vmatpush1.msra.mxu0 0.0
  %1478 = vmatprep.subr.mxu0 0.0
  %1479 = vmatpush1.msra.mxu0 0.0
  %1480 = vmatprep.subr.mxu0 0.0
  %1481 = vmatpush1.msra.mxu0 0.0
  %1482 = vmatprep.subr.mxu0 0.0
  %1483 = vmatpush1.msra.mxu0 0.0
  %1484 = vmatprep.subr.mxu0 0.0
  %1485 = vmatpush1.msra.mxu0 0.0
  %1486 = vmatprep.subr.mxu0 0.0
  %1487 = vmatpush1.msra.mxu0 0.0
  %1488 = vmatprep.mubr.f32.mxu0 0.0
  %1489 = vmatmul.mubr.f32.gmra.mrb[0].mxu0 %v1422
  %v1490 = vpop.f32.mrb[0].mxu0
  %v1491 = vadd.f32 %v1420, %v1490
  %v1492 = vpop.f32.mrb[0].mxu0
  %1493 = vdwg.mxu0
  %v1494 = vld [vmem:[%s2] sm:$0xff]
  %v1495 = vld [vmem:[%s2 + $0x8] sm:$0xff]
  %v1496 = vld [vmem:[%s2 + $0x10] sm:$0xff]
  %v1497 = vld [vmem:[%s2 + $0x18] sm:$0xff]
  %v1498 = vld [vmem:[%s2 + $0x20] sm:$0x1]
  %v1499 = vlaneseq
  %v1500 = vshrl.u32 %v1499, 7
  %v1501 = vsub.s32 0, %v1500
  %v1502 = vrot.slane %v1498, %v1501
  %v1504 = vsel %vm159, %v1491, 0
  %1506 = vmatprep.subr.mxu0 0.0
  %1507 = vmatpush1.msra.mxu0 %v1494
  %1508 = vmatprep.subr.mxu0 0.0
  %1509 = vmatpush1.msra.mxu0 %v1495
  %1510 = vmatprep.subr.mxu0 0.0
  %1511 = vmatpush1.msra.mxu0 %v1496
  %1512 = vmatprep.subr.mxu0 0.0
  %1513 = vmatpush1.msra.mxu0 %v1497
  %1514 = vmatprep.subr.mxu0 0.0
  %1515 = vmatpush1.msra.mxu0 0.0
  %1516 = vmatprep.subr.mxu0 0.0
  %1517 = vmatpush1.msra.mxu0 0.0
  %1518 = vmatprep.subr.mxu0 0.0
  %1519 = vmatpush1.msra.mxu0 0.0
  %1520 = vmatprep.subr.mxu0 0.0
  %1521 = vmatpush1.msra.mxu0 0.0
  %1522 = vmatprep.subr.mxu0 0.0
  %1523 = vmatpush1.msra.mxu0 0.0
  %1524 = vmatprep.subr.mxu0 0.0
  %1525 = vmatpush1.msra.mxu0 0.0
  %1526 = vmatprep.subr.mxu0 0.0
  %1527 = vmatpush1.msra.mxu0 0.0
  %1528 = vmatprep.subr.mxu0 0.0
  %1529 = vmatpush1.msra.mxu0 0.0
  %1530 = vmatprep.subr.mxu0 0.0
  %1531 = vmatpush1.msra.mxu0 0.0
  %1532 = vmatprep.subr.mxu0 0.0
  %1533 = vmatpush1.msra.mxu0 0.0
  %1534 = vmatprep.subr.mxu0 0.0
  %1535 = vmatpush1.msra.mxu0 0.0
  %1536 = vmatprep.subr.mxu0 0.0
  %1537 = vmatpush1.msra.mxu0 0.0
  %1538 = vmatprep.subr.mxu0 0.0
  %1539 = vmatpush1.msra.mxu0 0.0
  %1540 = vmatprep.subr.mxu0 0.0
  %1541 = vmatpush1.msra.mxu0 0.0
  %1542 = vmatprep.subr.mxu0 0.0
  %1543 = vmatpush1.msra.mxu0 0.0
  %1544 = vmatprep.subr.mxu0 0.0
  %1545 = vmatpush1.msra.mxu0 0.0
  %1546 = vmatprep.subr.mxu0 0.0
  %1547 = vmatpush1.msra.mxu0 0.0
  %1548 = vmatprep.subr.mxu0 0.0
  %1549 = vmatpush1.msra.mxu0 0.0
  %1550 = vmatprep.subr.mxu0 0.0
  %1551 = vmatpush1.msra.mxu0 0.0
  %1552 = vmatprep.subr.mxu0 0.0
  %1553 = vmatpush1.msra.mxu0 0.0
  %1554 = vmatprep.subr.mxu0 0.0
  %1555 = vmatpush1.msra.mxu0 0.0
  %1556 = vmatprep.subr.mxu0 0.0
  %1557 = vmatpush1.msra.mxu0 0.0
  %1558 = vmatprep.subr.mxu0 0.0
  %1559 = vmatpush1.msra.mxu0 0.0
  %1560 = vmatprep.subr.mxu0 0.0
  %1561 = vmatpush1.msra.mxu0 0.0
  %1562 = vmatprep.subr.mxu0 0.0
  %1563 = vmatpush1.msra.mxu0 0.0
  %1564 = vmatprep.subr.mxu0 0.0
  %1565 = vmatpush1.msra.mxu0 0.0
  %1566 = vmatprep.subr.mxu0 0.0
  %1567 = vmatpush1.msra.mxu0 0.0
  %1568 = vmatprep.subr.mxu0 0.0
  %1569 = vmatpush1.msra.mxu0 0.0
  %1570 = vmatprep.mubr.f32.mxu0 0.0
  %1571 = vmatmul.mubr.f32.gmra.mrb[0].mxu0 %v1504
  %v1572 = vpop.f32.mrb[0].mxu0
  %v1573 = vadd.f32 %v1502, %v1572
  %v1574 = vpop.f32.mrb[0].mxu0
  %1575 = vdwg.mxu0
  %vm1576 = vcmp.gt.f32.partialorder %v1573, 0.0
  %v1577 = vmin.f32 %v1573, 0.0
  %v1578 = vmul.f32 %v1577, 1.442695
  %v1579 = vpow.pop %v1578
  %v1580 = vsub.f32 %v1579, 1.0
  %v1581 = vsel %vm1576, %v1573, %v1580
  %v1582 = vld [vmem:[%s2 + $0x28] sm:$0xff]
  %v1583 = vld [vmem:[%s2 + $0x30] sm:$0xff]
  %v1584 = vld [vmem:[%s2 + $0x38] sm:$0xff]
  %v1585 = vld [vmem:[%s2 + $0x40] sm:$0xff]
  %v1586 = vld [vmem:[%s2 + $0x48] sm:$0xff]
  %v1587 = vld [vmem:[%s2 + $0x50] sm:$0xff]
  %v1588 = vld [vmem:[%s2 + $0x58] sm:$0xff]
  %v1589 = vld [vmem:[%s2 + $0x60] sm:$0xff]
  %v1590 = vld [vmem:[%s2 + $0x68] sm:$0xff]
  %v1591 = vld [vmem:[%s2 + $0x70] sm:$0xff]
  %v1592 = vld [vmem:[%s2 + $0x78] sm:$0xff]
  %v1593 = vld [vmem:[%s2 + $0x80] sm:$0xff]
  %v1594 = vld [vmem:[%s2 + $0x88] sm:$0x1]
  %v1595 = vlaneseq
  %v1596 = vshrl.u32 %v1595, 7
  %v1597 = vsub.s32 0, %v1596
  %v1598 = vrot.slane %v1594, %v1597
  %vm1599 = vcmask 785408
  %v1601 = vsel %vm1599, %v1581, 0
  %1603 = vmatprep.subr.mxu0 0.0
  %1604 = vmatpush1.msra.mxu0 %v1582
  %1605 = vmatprep.subr.mxu0 0.0
  %1606 = vmatpush1.msra.mxu0 %v1583
  %1607 = vmatprep.subr.mxu0 0.0
  %1608 = vmatpush1.msra.mxu0 %v1584
  %1609 = vmatprep.subr.mxu0 0.0
  %1610 = vmatpush1.msra.mxu0 %v1585
  %1611 = vmatprep.subr.mxu0 0.0
  %1612 = vmatpush1.msra.mxu0 %v1586
  %1613 = vmatprep.subr.mxu0 0.0
  %1614 = vmatpush1.msra.mxu0 %v1587
  %1615 = vmatprep.subr.mxu0 0.0
  %1616 = vmatpush1.msra.mxu0 %v1588
  %1617 = vmatprep.subr.mxu0 0.0
  %1618 = vmatpush1.msra.mxu0 %v1589
  %1619 = vmatprep.subr.mxu0 0.0
  %1620 = vmatpush1.msra.mxu0 %v1590
  %1621 = vmatprep.subr.mxu0 0.0
  %1622 = vmatpush1.msra.mxu0 %v1591
  %1623 = vmatprep.subr.mxu0 0.0
  %1624 = vmatpush1.msra.mxu0 %v1592
  %1625 = vmatprep.subr.mxu0 0.0
  %1626 = vmatpush1.msra.mxu0 %v1593
  %1627 = vmatprep.subr.mxu0 0.0
  %1628 = vmatpush1.msra.mxu0 0.0
  %1629 = vmatprep.subr.mxu0 0.0
  %1630 = vmatpush1.msra.mxu0 0.0
  %1631 = vmatprep.subr.mxu0 0.0
  %1632 = vmatpush1.msra.mxu0 0.0
  %1633 = vmatprep.subr.mxu0 0.0
  %1634 = vmatpush1.msra.mxu0 0.0
  %1635 = vmatprep.subr.mxu0 0.0
  %1636 = vmatpush1.msra.mxu0 0.0
  %1637 = vmatprep.subr.mxu0 0.0
  %1638 = vmatpush1.msra.mxu0 0.0
  %1639 = vmatprep.subr.mxu0 0.0
  %1640 = vmatpush1.msra.mxu0 0.0
  %1641 = vmatprep.subr.mxu0 0.0
  %1642 = vmatpush1.msra.mxu0 0.0
  %1643 = vmatprep.subr.mxu0 0.0
  %1644 = vmatpush1.msra.mxu0 0.0
  %1645 = vmatprep.subr.mxu0 0.0
  %1646 = vmatpush1.msra.mxu0 0.0
  %1647 = vmatprep.subr.mxu0 0.0
  %1648 = vmatpush1.msra.mxu0 0.0
  %1649 = vmatprep.subr.mxu0 0.0
  %1650 = vmatpush1.msra.mxu0 0.0
  %1651 = vmatprep.subr.mxu0 0.0
  %1652 = vmatpush1.msra.mxu0 0.0
  %1653 = vmatprep.subr.mxu0 0.0
  %1654 = vmatpush1.msra.mxu0 0.0
  %1655 = vmatprep.subr.mxu0 0.0
  %1656 = vmatpush1.msra.mxu0 0.0
  %1657 = vmatprep.subr.mxu0 0.0
  %1658 = vmatpush1.msra.mxu0 0.0
  %1659 = vmatprep.subr.mxu0 0.0
  %1660 = vmatpush1.msra.mxu0 0.0
  %1661 = vmatprep.subr.mxu0 0.0
  %1662 = vmatpush1.msra.mxu0 0.0
  %1663 = vmatprep.subr.mxu0 0.0
  %1664 = vmatpush1.msra.mxu0 0.0
  %1665 = vmatprep.subr.mxu0 0.0
  %1666 = vmatpush1.msra.mxu0 0.0
  %1667 = vmatprep.mubr.f32.mxu0 0.0
  %1668 = vmatmul.mubr.f32.gmra.mrb[0].mxu0 %v1601
  %v1669 = vpop.f32.mrb[0].mxu0
  %v1670 = vadd.f32 %v1598, %v1669
  %v1671 = vpop.f32.mrb[0].mxu0
  %1672 = vdwg.mxu0
  %vm1673 = vcmp.gt.f32.partialorder %v1670, 0.0
  %v1674 = vmin.f32 %v1670, 0.0
  %v1675 = vmul.f32 %v1674, 1.442695
  %v1676 = vpow.pop %v1675
  %v1677 = vsub.f32 %v1676, 1.0
  %v1678 = vsel %vm1673, %v1670, %v1677
  %v1679 = vld [vmem:[%s2 + $0x90] sm:$0xff]
  %v1680 = vld [vmem:[%s2 + $0x98] sm:$0xff]
  %v1681 = vld [vmem:[%s2 + $0xa0] sm:$0xff]
  %v1682 = vld [vmem:[%s2 + $0xa8] sm:$0xff]
  %v1683 = vld [vmem:[%s2 + $0xb0] sm:$0xff]
  %v1684 = vld [vmem:[%s2 + $0xb8] sm:$0xff]
  %v1685 = vld [vmem:[%s2 + $0xc0] sm:$0xff]
  %v1686 = vld [vmem:[%s2 + $0xc8] sm:$0xff]
  %v1687 = vld [vmem:[%s2 + $0xd0] sm:$0xff]
  %v1688 = vld [vmem:[%s2 + $0xd8] sm:$0xff]
  %v1689 = vld [vmem:[%s2 + $0xe0] sm:$0xff]
  %v1690 = vld [vmem:[%s2 + $0xe8] sm:$0xff]
  %v1691 = vld [vmem:[%s2 + $0xf0] sm:$0x1]
  %v1692 = vlaneseq
  %v1693 = vshrl.u32 %v1692, 7
  %v1694 = vsub.s32 0, %v1693
  %v1695 = vrot.slane %v1691, %v1694
  %v1697 = vsel %vm1599, %v1678, 0
  %1699 = vmatprep.subr.mxu0 0.0
  %1700 = vmatpush1.msra.mxu0 %v1679
  %1701 = vmatprep.subr.mxu0 0.0
  %1702 = vmatpush1.msra.mxu0 %v1680
  %1703 = vmatprep.subr.mxu0 0.0
  %1704 = vmatpush1.msra.mxu0 %v1681
  %1705 = vmatprep.subr.mxu0 0.0
  %1706 = vmatpush1.msra.mxu0 %v1682
  %1707 = vmatprep.subr.mxu0 0.0
  %1708 = vmatpush1.msra.mxu0 %v1683
  %1709 = vmatprep.subr.mxu0 0.0
  %1710 = vmatpush1.msra.mxu0 %v1684
  %1711 = vmatprep.subr.mxu0 0.0
  %1712 = vmatpush1.msra.mxu0 %v1685
  %1713 = vmatprep.subr.mxu0 0.0
  %1714 = vmatpush1.msra.mxu0 %v1686
  %1715 = vmatprep.subr.mxu0 0.0
  %1716 = vmatpush1.msra.mxu0 %v1687
  %1717 = vmatprep.subr.mxu0 0.0
  %1718 = vmatpush1.msra.mxu0 %v1688
  %1719 = vmatprep.subr.mxu0 0.0
  %1720 = vmatpush1.msra.mxu0 %v1689
  %1721 = vmatprep.subr.mxu0 0.0
  %1722 = vmatpush1.msra.mxu0 %v1690
  %1723 = vmatprep.subr.mxu0 0.0
  %1724 = vmatpush1.msra.mxu0 0.0
  %1725 = vmatprep.subr.mxu0 0.0
  %1726 = vmatpush1.msra.mxu0 0.0
  %1727 = vmatprep.subr.mxu0 0.0
  %1728 = vmatpush1.msra.mxu0 0.0
  %1729 = vmatprep.subr.mxu0 0.0
  %1730 = vmatpush1.msra.mxu0 0.0
  %1731 = vmatprep.subr.mxu0 0.0
  %1732 = vmatpush1.msra.mxu0 0.0
  %1733 = vmatprep.subr.mxu0 0.0
  %1734 = vmatpush1.msra.mxu0 0.0
  %1735 = vmatprep.subr.mxu0 0.0
  %1736 = vmatpush1.msra.mxu0 0.0
  %1737 = vmatprep.subr.mxu0 0.0
  %1738 = vmatpush1.msra.mxu0 0.0
  %1739 = vmatprep.subr.mxu0 0.0
  %1740 = vmatpush1.msra.mxu0 0.0
  %1741 = vmatprep.subr.mxu0 0.0
  %1742 = vmatpush1.msra.mxu0 0.0
  %1743 = vmatprep.subr.mxu0 0.0
  %1744 = vmatpush1.msra.mxu0 0.0
  %1745 = vmatprep.subr.mxu0 0.0
  %1746 = vmatpush1.msra.mxu0 0.0
  %1747 = vmatprep.subr.mxu0 0.0
  %1748 = vmatpush1.msra.mxu0 0.0
  %1749 = vmatprep.subr.mxu0 0.0
  %1750 = vmatpush1.msra.mxu0 0.0
  %1751 = vmatprep.subr.mxu0 0.0
  %1752 = vmatpush1.msra.mxu0 0.0
  %1753 = vmatprep.subr.mxu0 0.0
  %1754 = vmatpush1.msra.mxu0 0.0
  %1755 = vmatprep.subr.mxu0 0.0
  %1756 = vmatpush1.msra.mxu0 0.0
  %1757 = vmatprep.subr.mxu0 0.0
  %1758 = vmatpush1.msra.mxu0 0.0
  %1759 = vmatprep.subr.mxu0 0.0
  %1760 = vmatpush1.msra.mxu0 0.0
  %1761 = vmatprep.subr.mxu0 0.0
  %1762 = vmatpush1.msra.mxu0 0.0
  %1763 = vmatprep.mubr.f32.mxu0 0.0
  %1764 = vmatmul.mubr.f32.gmra.mrb[0].mxu0 %v1697
  %v1765 = vpop.f32.mrb[0].mxu0
  %v1766 = vadd.f32 %v1695, %v1765
  %v1767 = vpop.f32.mrb[0].mxu0
  %1768 = vdwg.mxu0
  %v1769 = vmax.f32 %v1766, 0.0
  %v1770 = vand.u32 2147483647, %v1766
  %v1771 = vsub.f32 0.0, %v1770
  %v1772 = vmul.f32 %v1771, 1.442695
  %v1773 = vpow.pop %v1772
  %v1774 = vadd.f32 %v1773, 1.0
  %v1775 = vlog2.pop %v1774
  %v1776 = vmul.f32 %v1775, 0.6931472
  %v1777 = vmul.f32 -0.5, %v1773
  %v1778 = vadd.f32 %v1777, 1.0
  %v1779 = vmul.f32 %v1778, %v1773
  %v1780 = vand.u32 2147483647, %v1773
  %vm1781 = vcmp.lt.f32.partialorder %v1780, 0.0004427343
  %v1782 = vsel %vm1781, %v1779, %v1776
  %v1783 = vadd.f32 %v1769, %v1782
  %v1784 = vadd.f32 %v1783, 1e-05
  %v1785 = vadd.f32 %v1783, 0.00101
  %v1786 = vrcp.pop %v1785
  %vm1787 = vcmp.lt.s32.totalorder %v113, 12
  %vm1788 = vcmp.lt.s32.totalorder %v113, 24
  %v1789 = vsel %vm1788, %v1783, %v1786
  %v1790 = vsel %vm1787, %v1784, %v1789
  %vm1791 = vcmask 386048
  %1792 = vst.msk [vmem:[%s3] sm:$0x3] %vm1791, %v1790
  // Predicated region
  $region14: #{deepstpp_forward.1} parent=0 // pred_check
    _
  $region15: #{deepstpp_forward.1} parent=0 // pred_check_branch
    %1794 = sbr.rel (0) target = $region17
  $region16: #{deepstpp_forward.1} parent=0 // pred_region
    _
  $region17: #{deepstpp_forward.1} parent=0 // pred_fallthru
    _
  // Predicated region
  $region18: #{deepstpp_forward.1} parent=0 // pred_check
    _
  $region19: #{deepstpp_forward.1} parent=0 // pred_check_branch
    %1796 = sbr.rel (0) target = $region21
  $region20: #{deepstpp_forward.1} parent=0 // pred_region
    _
  $region21: #{deepstpp_forward.1} parent=0 // pred_fallthru
    _

</llo_original>
